<compile_context>
chip_gen: v6e
topology: v6e:2x2x1
jax: 0.10.0
libtpu: 0.0.40
codegen_flags: <defaults>
</compile_context>

<pallas_src>
import math
import functools

import jax
import jax.numpy as jnp
from jax import lax
from jax.experimental import pallas as pl
from jax.experimental.pallas import tpu as pltpu

K = 8                                    # basis_asg_num
CONST = math.sqrt(2.0) * math.pi ** (2.0 / 3.0)
F0 = 0.04
EPS_NORM = 1e-12                         # F.normalize eps
EPS2 = EPS_NORM * EPS_NORM
SUB = 8                                  # sublanes per compute chunk
P_COLS = 13                              # per-basis constant-table width


# ------------------------------ helpers -----------------------------------
def _acos_poly(x):
    """arccos via the Abramowitz & Stegun 4.4.46 minimax polynomial.

    |error| <= ~2e-8 rad; only mul/add/sqrt/select, so it lowers cleanly on
    Mosaic and costs roughly half the VALU work of the generic arccos."""
    xa = jnp.abs(x)
    p = -0.0012624911
    for coef in (0.0066700901, -0.0170881256, 0.0308918810, -0.0501743046,
                 0.0889789874, -0.2145988016, 1.5707963050):
        p = p * xa + coef
    r = p * jnp.sqrt(jnp.maximum(1.0 - xa, 0.0))
    return jnp.where(x < 0.0, math.pi - r, r)


# ----------------------------- Pallas kernel -------------------------------
def asg_kernel(prm_ref, wi_ref, wo_ref, alpha_ref, out_ref):
    # prm_ref  : SMEM (K, 13) = [asg_x(3), asg_y(3), asg_z(3),
    #                            1/lam^2, 1/miu^2, -0.5/sig^2, 1/(CONST*sig)]
    # wi_ref   : VMEM (3, CB, 8, LC)
    # wo_ref   : VMEM (3, CB, 8, LC)
    # alpha_ref: VMEM (K, CB, 8, LC)
    # out_ref  : VMEM (CB, 8, LC)
    cb = out_ref.shape[0]
    kk = alpha_ref.shape[0]

    def chunk_body(c, carry):
        # -------- half vector + Fresnel: dense (8, LC) tiles --------
        wix = wi_ref[0, c, :, :]
        wiy = wi_ref[1, c, :, :]
        wiz = wi_ref[2, c, :, :]
        wox = wo_ref[0, c, :, :]
        woy = wo_ref[1, c, :, :]
        woz = wo_ref[2, c, :, :]

        hx = wix + wox
        hy = wiy + woy
        hz = wiz + woz
        # normalize(half): rsqrt on EUP, max matches F.normalize's eps clamp
        inv_hn = lax.rsqrt(jnp.maximum(hx * hx + hy * hy + hz * hz, EPS2))
        hx = hx * inv_hn
        hy = hy * inv_hn
        hz = hz * inv_hn

        # Fresnel = F0 + (1-F0) * clamp(1 - dot(wi, half), 0, 1)^5
        d_wih = wix * hx + wiy * hy + wiz * hz
        om = jnp.clip(1.0 - d_wih, 0.0, 1.0)
        om2 = om * om
        fres = F0 + (1.0 - F0) * (om2 * om2 * om)

        acc = jnp.zeros_like(hx)

        # -------- per-basis mixture (unrolled; per-k temps die fast) --------
        for k in range(kk):
            axx = prm_ref[k, 0]
            axy = prm_ref[k, 1]
            axz = prm_ref[k, 2]
            ayx = prm_ref[k, 3]
            ayy = prm_ref[k, 4]
            ayz = prm_ref[k, 5]
            azx = prm_ref[k, 6]
            azy = prm_ref[k, 7]
            azz = prm_ref[k, 8]
            inv_lam2 = prm_ref[k, 9]
            inv_miu2 = prm_ref[k, 10]
            neg_half_inv_sig2 = prm_ref[k, 11]
            inv_const_sig = prm_ref[k, 12]

            proj = hx * azx + hy * azy + hz * azz
            # Orthonormal ASG frame (asg_axises come from build_rotation, so
            # asg_x, asg_y are orthogonal to asg_z and |h| = |asg_z| = 1):
            #   s_raw . asg_x = h . asg_x,  s_raw . asg_y = h . asg_y,
            #   |s_raw|^2     = 1 - proj^2.
            dot_x = hx * axx + hy * axy + hz * axz
            dot_y = hx * ayx + hy * ayy + hz * ayz
            ss = jnp.maximum(1.0 - proj * proj, EPS2)     # == max(|s|,eps)^2
            inv_ss = pl.reciprocal(ss, approx=True)       # EUP slot
            inv_ss = inv_ss * (2.0 - ss * inv_ss)         # 1 Newton step (fp32)

            # aniso^2 = (dot_x/lam)^2 + (dot_y/miu)^2 on the normalized s
            aniso2 = (dot_x * dot_x * inv_lam2 +
                      dot_y * dot_y * inv_miu2) * inv_ss

            cos_t = jnp.clip(proj, -1.0 + 1e-6, 1.0 - 1e-6)
            ac = _acos_poly(cos_t)
            # exp(-0.5*(acos*aniso/sig)^2)/(CONST*sig)
            term = jnp.exp(ac * ac * aniso2 * neg_half_inv_sig2) * inv_const_sig
            acc = acc + alpha_ref[k, c, :, :] * term

        out_ref[c, :, :] = acc * fres
        return carry

    lax.fori_loop(0, cb, chunk_body, 0)


# ------------------------------- tiling ------------------------------------
def _choose_tiling(n_points, *, step_points_max=32768):
    """Pick (lane_chunk LC, chunks_per_step CB, total_chunks padded NC).

    * 8*LC points form one dense compute chunk (bounded vreg live ranges),
    * CB chunks (= CB*8*LC points, ~32K by default) form one grid step so the
      ~0.35us per-step overhead is amortized,
    * keep >= 8 grid steps when there is enough work (software pipelining and
      both v7x TensorCores busy) while padding waste stays <= ~12.5%.
    """
    lc = 512 if n_points >= 4 * SUB * 512 else 128
    chunk_pts = SUB * lc
    nc = pl.cdiv(n_points, chunk_pts)
    cb = max(1, min(step_points_max // chunk_pts, nc))
    while cb > 1 and nc // cb < 8:
        cb //= 2
    nc_pad = pl.cdiv(nc, cb) * cb
    return lc, cb, nc_pad


def pack_params(asg_scales, asg_axises, asg_sigma):
    """Host-side per-basis constant table (K, 13) with reciprocals baked in."""
    lam = asg_scales[:, 0]
    miu = asg_scales[:, 1]
    sig = asg_sigma
    cols = [
        asg_axises[:, :, 0],                       # asg_x  (K,3)
        asg_axises[:, :, 1],                       # asg_y  (K,3)
        asg_axises[:, :, 2],                       # asg_z  (K,3)
        (1.0 / (lam * lam))[:, None],              # 1/lam^2
        (1.0 / (miu * miu))[:, None],              # 1/miu^2
        (-0.5 / (sig * sig))[:, None],             # -0.5/sig^2
        (1.0 / (CONST * sig))[:, None],            # 1/(CONST*sig)
    ]
    return jnp.concatenate(cols, axis=1).astype(jnp.float32)   # (K, 13)


# --------------------------- pallas_call wrapper ----------------------------
def _asg_forward_cf(params, wi_cf, wo_cf, alpha_cf, *, cb):
    """Channel-first core.  wi_cf/wo_cf: (3, NC, 8, LC); alpha_cf: (K, NC, 8, LC)."""
    kk, nc, sub, lc = alpha_cf.shape
    grid = (nc // cb,)

    in_bytes = (3 + 3 + kk) * cb * sub * lc * 4
    out_bytes = cb * sub * lc * 4
    # double-buffered blocks + headroom; explicit so large sweeps also fit the
    # 16 MiB scoped default on v5e.
    vmem_limit = int(min(max(4 * (in_bytes + out_bytes), 16 << 20), 32 << 20))

    return pl.pallas_call(
        asg_kernel,
        out_shape=jax.ShapeDtypeStruct((nc, sub, lc), jnp.float32),
        grid_spec=pltpu.PrefetchScalarGridSpec(
            num_scalar_prefetch=1,                 # params -> SMEM
            grid=grid,
            in_specs=[
                pl.BlockSpec((3, cb, sub, lc), lambda i, prm: (0, i, 0, 0)),
                pl.BlockSpec((3, cb, sub, lc), lambda i, prm: (0, i, 0, 0)),
                pl.BlockSpec((kk, cb, sub, lc), lambda i, prm: (0, i, 0, 0)),
            ],
            out_specs=pl.BlockSpec((cb, sub, lc), lambda i, prm: (i, 0, 0)),
        ),
        compiler_params=pltpu.CompilerParams(
            dimension_semantics=("parallel",),
            vmem_limit_bytes=vmem_limit,
        ),
    )(params, wi_cf, wo_cf, alpha_cf)


@functools.partial(jax.jit, static_argnames=("step_points_max",))
def mixture_of_asg_forward(wi, wo, alpha, asg_scales, asg_axises, asg_sigma,
                           *, step_points_max=32768):
    """wi, wo: (N,3); alpha: (N,K); asg_scales: (K,2); asg_axises: (K,3,3)
    (orthonormal, from build_rotation); asg_sigma: (K,). Returns (N,1)."""
    n = wi.shape[0]
    lc, cb, nc_pad = _choose_tiling(n, step_points_max=step_points_max)
    n_pad = nc_pad * SUB * lc

    # NOTE(perf): this pad+transpose relayout is a full extra HBM pass done by
    # XLA outside the kernel; producers that can supply channel-first
    # (C, NC, 8, LC) data should call _asg_forward_cf directly and skip it.
    def to_cf(x):                                   # (N, C) -> (C, NC, 8, LC)
        c = x.shape[1]
        xp = jnp.pad(x.astype(jnp.float32), ((0, n_pad - n), (0, 0)))
        return xp.T.reshape(c, nc_pad, SUB, lc)

    params = pack_params(asg_scales, asg_axises, asg_sigma)
    out = _asg_forward_cf(params, to_cf(wi), to_cf(wo), to_cf(alpha), cb=cb)
    return out.reshape(n_pad)[:n][:, None]          # (N, 1)


# ------------------- deterministic parameter construction -------------------
def build_rotation(q):
    """Quaternion (K,4) [r,x,y,z] -> rotation matrices (K,3,3). Standard 3DGS."""
    q = q / jnp.linalg.norm(q, axis=-1, keepdims=True)
    r, x, y, z = q[:, 0], q[:, 1], q[:, 2], q[:, 3]
    R = jnp.stack([
        1 - 2 * (y * y + z * z), 2 * (x * y - r * z),     2 * (x * z + r * y),
        2 * (x * y + r * z),     1 - 2 * (x * x + z * z), 2 * (y * z - r * x),
        2 * (x * z - r * y),     2 * (y * z + r * x),     1 - 2 * (x * x + y * y),
    ], axis=-1).reshape(-1, 3, 3)
    return R


def init_module_params(rot_key):
    """Mirror Mixture_of_ASG.__init__ + its properties (random rotations to
    exercise general orthonormal frames)."""
    sigma_ratio = jax.nn.softplus(jnp.linspace(-2.0, 0.0, K))          # (K,)
    asg_sigma_param = jnp.zeros((K,), jnp.float32)
    asg_scales_param = jnp.full((K, 2), -2.1972, jnp.float32)
    asg_scales_param = asg_scales_param.at[:, 0].multiply(0.5)
    asg_rot_param = jax.random.normal(rot_key, (K, 4), jnp.float32)

    asg_scales = jax.nn.sigmoid(asg_scales_param) * 10.0               # lam, miu
    asg_sigma = jax.nn.sigmoid(asg_sigma_param) * sigma_ratio          # sigma
    asg_axises = build_rotation(asg_rot_param)                         # (K,3,3)
    return asg_scales, asg_axises, asg_sigma


# ---------------------------- pure-JAX reference ----------------------------
def reference_forward(wi, wo, alpha, asg_scales, asg_axises, asg_sigma):
    def normalize(x):
        return x / jnp.maximum(jnp.linalg.norm(x, axis=-1, keepdims=True), EPS_NORM)

    half = normalize(wo + wi)                                           # (N,3)
    fres = F0 + (1 - F0) * jnp.clip(
        1.0 - jnp.sum(wi * half, -1, keepdims=True), 0.0, 1.0) ** 5
    half_e = half[:, None, :]                                           # (N,1,3)
    asg_x = asg_axises[None, :, :, 0]
    asg_y = asg_axises[None, :, :, 1]
    asg_z = asg_axises[None, :, :, 2]
    lam = asg_scales[None, :, 0]
    miu = asg_scales[None, :, 1]
    sig = asg_sigma[None, :]
    proj = jnp.sum(half_e * asg_z, -1, keepdims=True)
    s = normalize(half_e - proj * asg_z)
    aniso = jnp.sqrt((jnp.sum(s * asg_x, -1) / lam) ** 2 +
                     (jnp.sum(s * asg_y, -1) / miu) ** 2)
    cos_t = jnp.clip(proj[..., 0], -1 + 1e-6, 1 - 1e-6)
    asg_res = jnp.exp(-0.5 * (jnp.arccos(cos_t) * aniso / sig) ** 2) / (CONST * sig)
    mm = jnp.sum(alpha * asg_res, -1, keepdims=True)
    return mm * fres


# ---------------------------------- main ------------------------------------
if __name__ == "__main__":
    key = jax.random.PRNGKey(0)
    k1, k2, k3, k4 = jax.random.split(key, 4)

    N = 256
    wi = jax.random.normal(k1, (N, 3), jnp.float32)
    wo = jax.random.normal(k2, (N, 3), jnp.float32)
    wi = wi / jnp.linalg.norm(wi, axis=-1, keepdims=True)
    wo = wo / jnp.linalg.norm(wo, axis=-1, keepdims=True)
    alpha = jax.random.uniform(k3, (N, K), jnp.float32)

    asg_scales, asg_axises, asg_sigma = init_module_params(k4)

    out = mixture_of_asg_forward(wi, wo, alpha, asg_scales, asg_axises, asg_sigma)
    out = jax.block_until_ready(out)

    ref = reference_forward(wi, wo, alpha, asg_scales, asg_axises, asg_sigma)
    assert out.shape == (N, 1)
    err = float(jnp.max(jnp.abs(out - ref)))
    assert jnp.allclose(out, ref, rtol=1e-3, atol=2e-4), f"max abs err {err}"

    print("KERNEL_OK")
</pallas_src>

<mosaic_0001>
module attributes {stable_mosaic.version = 11 : i64} {
  func.func @asg_kernel(%arg0: i32, %arg1: memref<8x13xf32, #tpu.memory_space<smem>>, %arg2: memref<3x1x8x128xf32, #tpu.memory_space<vmem>>, %arg3: memref<3x1x8x128xf32, #tpu.memory_space<vmem>>, %arg4: memref<8x1x8x128xf32, #tpu.memory_space<vmem>>, %arg5: memref<1x8x128xf32, #tpu.memory_space<vmem>>) attributes {dimension_semantics = [#tpu.dimension_semantics<parallel>], iteration_bounds = array<i64: 1>, scalar_prefetch = 1 : i64, scratch_operands = 0 : i64, tpu.core_type = #tpu.core_type<tc>, window_params = [{transform_indices = @transform_0, window_bounds = array<i64: 3, 1, 8, 128>}, {transform_indices = @transform_1, window_bounds = array<i64: 3, 1, 8, 128>}, {transform_indices = @transform_2, window_bounds = array<i64: 8, 1, 8, 128>}, {transform_indices = @transform_3, window_bounds = array<i64: 1, 8, 128>}]} {
    %c0_i32 = arith.constant 0 : i32
    %c0 = arith.constant 0 : index
    %0 = arith.index_cast %c0_i32 : i32 to index
    %c0_0 = arith.constant 0 : index
    %c0_1 = arith.constant 0 : index
    %1 = vector.load %arg2[%c0, %0, %c0_0, %c0_1] : memref<3x1x8x128xf32, #tpu.memory_space<vmem>>, vector<1x1x8x128xf32>
    %2 = vector.shape_cast %1 : vector<1x1x8x128xf32> to vector<8x128xf32>
    %c1 = arith.constant 1 : index
    %3 = arith.index_cast %c0_i32 : i32 to index
    %c0_2 = arith.constant 0 : index
    %c0_3 = arith.constant 0 : index
    %4 = vector.load %arg2[%c1, %3, %c0_2, %c0_3] : memref<3x1x8x128xf32, #tpu.memory_space<vmem>>, vector<1x1x8x128xf32>
    %5 = vector.shape_cast %4 : vector<1x1x8x128xf32> to vector<8x128xf32>
    %c2 = arith.constant 2 : index
    %6 = arith.index_cast %c0_i32 : i32 to index
    %c0_4 = arith.constant 0 : index
    %c0_5 = arith.constant 0 : index
    %7 = vector.load %arg2[%c2, %6, %c0_4, %c0_5] : memref<3x1x8x128xf32, #tpu.memory_space<vmem>>, vector<1x1x8x128xf32>
    %8 = vector.shape_cast %7 : vector<1x1x8x128xf32> to vector<8x128xf32>
    %c0_6 = arith.constant 0 : index
    %9 = arith.index_cast %c0_i32 : i32 to index
    %c0_7 = arith.constant 0 : index
    %c0_8 = arith.constant 0 : index
    %10 = vector.load %arg3[%c0_6, %9, %c0_7, %c0_8] : memref<3x1x8x128xf32, #tpu.memory_space<vmem>>, vector<1x1x8x128xf32>
    %11 = vector.shape_cast %10 : vector<1x1x8x128xf32> to vector<8x128xf32>
    %c1_9 = arith.constant 1 : index
    %12 = arith.index_cast %c0_i32 : i32 to index
    %c0_10 = arith.constant 0 : index
    %c0_11 = arith.constant 0 : index
    %13 = vector.load %arg3[%c1_9, %12, %c0_10, %c0_11] : memref<3x1x8x128xf32, #tpu.memory_space<vmem>>, vector<1x1x8x128xf32>
    %14 = vector.shape_cast %13 : vector<1x1x8x128xf32> to vector<8x128xf32>
    %c2_12 = arith.constant 2 : index
    %15 = arith.index_cast %c0_i32 : i32 to index
    %c0_13 = arith.constant 0 : index
    %c0_14 = arith.constant 0 : index
    %16 = vector.load %arg3[%c2_12, %15, %c0_13, %c0_14] : memref<3x1x8x128xf32, #tpu.memory_space<vmem>>, vector<1x1x8x128xf32>
    %17 = vector.shape_cast %16 : vector<1x1x8x128xf32> to vector<8x128xf32>
    %18 = arith.addf %2, %11 : vector<8x128xf32>
    %19 = arith.addf %5, %14 : vector<8x128xf32>
    %20 = arith.addf %8, %17 : vector<8x128xf32>
    %21 = arith.mulf %18, %18 : vector<8x128xf32>
    %22 = arith.mulf %19, %19 : vector<8x128xf32>
    %23 = arith.addf %21, %22 : vector<8x128xf32>
    %24 = arith.mulf %20, %20 : vector<8x128xf32>
    %25 = arith.addf %23, %24 : vector<8x128xf32>
    %cst = arith.constant 1.000000e-24 : f32
    %26 = vector.broadcast %cst : f32 to vector<8x128xf32>
    %27 = arith.maximumf %25, %26 : vector<8x128xf32>
    %28 = math.rsqrt %27 : vector<8x128xf32>
    %29 = arith.mulf %18, %28 : vector<8x128xf32>
    %30 = arith.mulf %19, %28 : vector<8x128xf32>
    %31 = arith.mulf %20, %28 : vector<8x128xf32>
    %32 = arith.mulf %2, %29 : vector<8x128xf32>
    %33 = arith.mulf %5, %30 : vector<8x128xf32>
    %34 = arith.addf %32, %33 : vector<8x128xf32>
    %35 = arith.mulf %8, %31 : vector<8x128xf32>
    %36 = arith.addf %34, %35 : vector<8x128xf32>
    %cst_15 = arith.constant 1.000000e+00 : f32
    %37 = vector.broadcast %cst_15 : f32 to vector<8x128xf32>
    %38 = arith.subf %37, %36 : vector<8x128xf32>
    %cst_16 = arith.constant 0.000000e+00 : f32
    %cst_17 = arith.constant 1.000000e+00 : f32
    %39 = vector.broadcast %cst_16 : f32 to vector<8x128xf32>
    %40 = arith.maximumf %39, %38 : vector<8x128xf32>
    %41 = vector.broadcast %cst_17 : f32 to vector<8x128xf32>
    %42 = arith.minimumf %41, %40 : vector<8x128xf32>
    %43 = arith.mulf %42, %42 : vector<8x128xf32>
    %44 = arith.mulf %43, %43 : vector<8x128xf32>
    %45 = arith.mulf %44, %42 : vector<8x128xf32>
    %cst_18 = arith.constant 0.959999978 : f32
    %46 = vector.broadcast %cst_18 : f32 to vector<8x128xf32>
    %47 = arith.mulf %46, %45 : vector<8x128xf32>
    %cst_19 = arith.constant 4.000000e-02 : f32
    %48 = vector.broadcast %cst_19 : f32 to vector<8x128xf32>
    %49 = arith.addf %48, %47 : vector<8x128xf32>
    %cst_20 = arith.constant 0.000000e+00 : f32
    %50 = vector.broadcast %cst_20 : f32 to vector<8x128xf32>
    %c0_21 = arith.constant 0 : index
    %c0_22 = arith.constant 0 : index
    %51 = memref.load %arg1[%c0_21, %c0_22] : memref<8x13xf32, #tpu.memory_space<smem>>
    %c0_23 = arith.constant 0 : index
    %c1_24 = arith.constant 1 : index
    %52 = memref.load %arg1[%c0_23, %c1_24] : memref<8x13xf32, #tpu.memory_space<smem>>
    %c0_25 = arith.constant 0 : index
    %c2_26 = arith.constant 2 : index
    %53 = memref.load %arg1[%c0_25, %c2_26] : memref<8x13xf32, #tpu.memory_space<smem>>
    %c0_27 = arith.constant 0 : index
    %c3 = arith.constant 3 : index
    %54 = memref.load %arg1[%c0_27, %c3] : memref<8x13xf32, #tpu.memory_space<smem>>
    %c0_28 = arith.constant 0 : index
    %c4 = arith.constant 4 : index
    %55 = memref.load %arg1[%c0_28, %c4] : memref<8x13xf32, #tpu.memory_space<smem>>
    %c0_29 = arith.constant 0 : index
    %c5 = arith.constant 5 : index
    %56 = memref.load %arg1[%c0_29, %c5] : memref<8x13xf32, #tpu.memory_space<smem>>
    %c0_30 = arith.constant 0 : index
    %c6 = arith.constant 6 : index
    %57 = memref.load %arg1[%c0_30, %c6] : memref<8x13xf32, #tpu.memory_space<smem>>
    %c0_31 = arith.constant 0 : index
    %c7 = arith.constant 7 : index
    %58 = memref.load %arg1[%c0_31, %c7] : memref<8x13xf32, #tpu.memory_space<smem>>
    %c0_32 = arith.constant 0 : index
    %c8 = arith.constant 8 : index
    %59 = memref.load %arg1[%c0_32, %c8] : memref<8x13xf32, #tpu.memory_space<smem>>
    %c0_33 = arith.constant 0 : index
    %c9 = arith.constant 9 : index
    %60 = memref.load %arg1[%c0_33, %c9] : memref<8x13xf32, #tpu.memory_space<smem>>
    %c0_34 = arith.constant 0 : index
    %c10 = arith.constant 10 : index
    %61 = memref.load %arg1[%c0_34, %c10] : memref<8x13xf32, #tpu.memory_space<smem>>
    %c0_35 = arith.constant 0 : index
    %c11 = arith.constant 11 : index
    %62 = memref.load %arg1[%c0_35, %c11] : memref<8x13xf32, #tpu.memory_space<smem>>
    %c0_36 = arith.constant 0 : index
    %c12 = arith.constant 12 : index
    %63 = memref.load %arg1[%c0_36, %c12] : memref<8x13xf32, #tpu.memory_space<smem>>
    %64 = vector.broadcast %57 : f32 to vector<8x128xf32>
    %65 = arith.mulf %29, %64 : vector<8x128xf32>
    %66 = vector.broadcast %58 : f32 to vector<8x128xf32>
    %67 = arith.mulf %30, %66 : vector<8x128xf32>
    %68 = arith.addf %65, %67 : vector<8x128xf32>
    %69 = vector.broadcast %59 : f32 to vector<8x128xf32>
    %70 = arith.mulf %31, %69 : vector<8x128xf32>
    %71 = arith.addf %68, %70 : vector<8x128xf32>
    %72 = vector.broadcast %51 : f32 to vector<8x128xf32>
    %73 = arith.mulf %29, %72 : vector<8x128xf32>
    %74 = vector.broadcast %52 : f32 to vector<8x128xf32>
    %75 = arith.mulf %30, %74 : vector<8x128xf32>
    %76 = arith.addf %73, %75 : vector<8x128xf32>
    %77 = vector.broadcast %53 : f32 to vector<8x128xf32>
    %78 = arith.mulf %31, %77 : vector<8x128xf32>
    %79 = arith.addf %76, %78 : vector<8x128xf32>
    %80 = vector.broadcast %54 : f32 to vector<8x128xf32>
    %81 = arith.mulf %29, %80 : vector<8x128xf32>
    %82 = vector.broadcast %55 : f32 to vector<8x128xf32>
    %83 = arith.mulf %30, %82 : vector<8x128xf32>
    %84 = arith.addf %81, %83 : vector<8x128xf32>
    %85 = vector.broadcast %56 : f32 to vector<8x128xf32>
    %86 = arith.mulf %31, %85 : vector<8x128xf32>
    %87 = arith.addf %84, %86 : vector<8x128xf32>
    %88 = arith.mulf %71, %71 : vector<8x128xf32>
    %cst_37 = arith.constant 1.000000e+00 : f32
    %89 = vector.broadcast %cst_37 : f32 to vector<8x128xf32>
    %90 = arith.subf %89, %88 : vector<8x128xf32>
    %cst_38 = arith.constant 1.000000e-24 : f32
    %91 = vector.broadcast %cst_38 : f32 to vector<8x128xf32>
    %92 = arith.maximumf %90, %91 : vector<8x128xf32>
    %93 = tpu.reciprocal %92 {approx = true} : vector<8x128xf32> -> vector<8x128xf32>
    %94 = arith.mulf %92, %93 : vector<8x128xf32>
    %cst_39 = arith.constant 2.000000e+00 : f32
    %95 = vector.broadcast %cst_39 : f32 to vector<8x128xf32>
    %96 = arith.subf %95, %94 : vector<8x128xf32>
    %97 = arith.mulf %93, %96 : vector<8x128xf32>
    %98 = arith.mulf %79, %79 : vector<8x128xf32>
    %99 = vector.broadcast %60 : f32 to vector<8x128xf32>
    %100 = arith.mulf %98, %99 : vector<8x128xf32>
    %101 = arith.mulf %87, %87 : vector<8x128xf32>
    %102 = vector.broadcast %61 : f32 to vector<8x128xf32>
    %103 = arith.mulf %101, %102 : vector<8x128xf32>
    %104 = arith.addf %100, %103 : vector<8x128xf32>
    %105 = arith.mulf %104, %97 : vector<8x128xf32>
    %cst_40 = arith.constant -0.999998986 : f32
    %cst_41 = arith.constant 0.999998986 : f32
    %106 = vector.broadcast %cst_40 : f32 to vector<8x128xf32>
    %107 = arith.maximumf %106, %71 : vector<8x128xf32>
    %108 = vector.broadcast %cst_41 : f32 to vector<8x128xf32>
    %109 = arith.minimumf %108, %107 : vector<8x128xf32>
    %110 = math.absf %109 : vector<8x128xf32>
    %cst_42 = arith.constant -0.0012624911 : f32
    %111 = vector.broadcast %cst_42 : f32 to vector<8x128xf32>
    %112 = arith.mulf %111, %110 : vector<8x128xf32>
    %cst_43 = arith.constant 6.670090e-03 : f32
    %113 = vector.broadcast %cst_43 : f32 to vector<8x128xf32>
    %114 = arith.addf %112, %113 : vector<8x128xf32>
    %115 = arith.mulf %114, %110 : vector<8x128xf32>
    %cst_44 = arith.constant -0.0170881264 : f32
    %116 = vector.broadcast %cst_44 : f32 to vector<8x128xf32>
    %117 = arith.addf %115, %116 : vector<8x128xf32>
    %118 = arith.mulf %117, %110 : vector<8x128xf32>
    %cst_45 = arith.constant 0.0308918804 : f32
    %119 = vector.broadcast %cst_45 : f32 to vector<8x128xf32>
    %120 = arith.addf %118, %119 : vector<8x128xf32>
    %121 = arith.mulf %120, %110 : vector<8x128xf32>
    %cst_46 = arith.constant -0.0501743034 : f32
    %122 = vector.broadcast %cst_46 : f32 to vector<8x128xf32>
    %123 = arith.addf %121, %122 : vector<8x128xf32>
    %124 = arith.mulf %123, %110 : vector<8x128xf32>
    %cst_47 = arith.constant 0.0889789909 : f32
    %125 = vector.broadcast %cst_47 : f32 to vector<8x128xf32>
    %126 = arith.addf %124, %125 : vector<8x128xf32>
    %127 = arith.mulf %126, %110 : vector<8x128xf32>
    %cst_48 = arith.constant -0.214598805 : f32
    %128 = vector.broadcast %cst_48 : f32 to vector<8x128xf32>
    %129 = arith.addf %127, %128 : vector<8x128xf32>
    %130 = arith.mulf %129, %110 : vector<8x128xf32>
    %cst_49 = arith.constant 1.57079625 : f32
    %131 = vector.broadcast %cst_49 : f32 to vector<8x128xf32>
    %132 = arith.addf %130, %131 : vector<8x128xf32>
    %cst_50 = arith.constant 1.000000e+00 : f32
    %133 = vector.broadcast %cst_50 : f32 to vector<8x128xf32>
    %134 = arith.subf %133, %110 : vector<8x128xf32>
    %cst_51 = arith.constant 0.000000e+00 : f32
    %135 = vector.broadcast %cst_51 : f32 to vector<8x128xf32>
    %136 = arith.maximumf %134, %135 : vector<8x128xf32>
    %137 = math.sqrt %136 : vector<8x128xf32>
    %138 = arith.mulf %132, %137 : vector<8x128xf32>
    %cst_52 = arith.constant 0.000000e+00 : f32
    %139 = vector.broadcast %cst_52 : f32 to vector<8x128xf32>
    %140 = arith.cmpf olt, %109, %139 : vector<8x128xf32>
    %cst_53 = arith.constant 3.14159274 : f32
    %141 = vector.broadcast %cst_53 : f32 to vector<8x128xf32>
    %142 = arith.subf %141, %138 : vector<8x128xf32>
    %143 = arith.select %140, %142, %138 : vector<8x128xi1>, vector<8x128xf32>
    %144 = arith.mulf %143, %143 : vector<8x128xf32>
    %145 = arith.mulf %144, %105 : vector<8x128xf32>
    %146 = vector.broadcast %62 : f32 to vector<8x128xf32>
    %147 = arith.mulf %145, %146 : vector<8x128xf32>
    %148 = math.exp %147 : vector<8x128xf32>
    %149 = vector.broadcast %63 : f32 to vector<8x128xf32>
    %150 = arith.mulf %148, %149 : vector<8x128xf32>
    %c0_54 = arith.constant 0 : index
    %151 = arith.index_cast %c0_i32 : i32 to index
    %c0_55 = arith.constant 0 : index
    %c0_56 = arith.constant 0 : index
    %152 = vector.load %arg4[%c0_54, %151, %c0_55, %c0_56] : memref<8x1x8x128xf32, #tpu.memory_space<vmem>>, vector<1x1x8x128xf32>
    %153 = vector.shape_cast %152 : vector<1x1x8x128xf32> to vector<8x128xf32>
    %154 = arith.mulf %153, %150 : vector<8x128xf32>
    %155 = arith.addf %50, %154 : vector<8x128xf32>
    %c1_57 = arith.constant 1 : index
    %c0_58 = arith.constant 0 : index
    %156 = memref.load %arg1[%c1_57, %c0_58] : memref<8x13xf32, #tpu.memory_space<smem>>
    %c1_59 = arith.constant 1 : index
    %c1_60 = arith.constant 1 : index
    %157 = memref.load %arg1[%c1_59, %c1_60] : memref<8x13xf32, #tpu.memory_space<smem>>
    %c1_61 = arith.constant 1 : index
    %c2_62 = arith.constant 2 : index
    %158 = memref.load %arg1[%c1_61, %c2_62] : memref<8x13xf32, #tpu.memory_space<smem>>
    %c1_63 = arith.constant 1 : index
    %c3_64 = arith.constant 3 : index
    %159 = memref.load %arg1[%c1_63, %c3_64] : memref<8x13xf32, #tpu.memory_space<smem>>
    %c1_65 = arith.constant 1 : index
    %c4_66 = arith.constant 4 : index
    %160 = memref.load %arg1[%c1_65, %c4_66] : memref<8x13xf32, #tpu.memory_space<smem>>
    %c1_67 = arith.constant 1 : index
    %c5_68 = arith.constant 5 : index
    %161 = memref.load %arg1[%c1_67, %c5_68] : memref<8x13xf32, #tpu.memory_space<smem>>
    %c1_69 = arith.constant 1 : index
    %c6_70 = arith.constant 6 : index
    %162 = memref.load %arg1[%c1_69, %c6_70] : memref<8x13xf32, #tpu.memory_space<smem>>
    %c1_71 = arith.constant 1 : index
    %c7_72 = arith.constant 7 : index
    %163 = memref.load %arg1[%c1_71, %c7_72] : memref<8x13xf32, #tpu.memory_space<smem>>
    %c1_73 = arith.constant 1 : index
    %c8_74 = arith.constant 8 : index
    %164 = memref.load %arg1[%c1_73, %c8_74] : memref<8x13xf32, #tpu.memory_space<smem>>
    %c1_75 = arith.constant 1 : index
    %c9_76 = arith.constant 9 : index
    %165 = memref.load %arg1[%c1_75, %c9_76] : memref<8x13xf32, #tpu.memory_space<smem>>
    %c1_77 = arith.constant 1 : index
    %c10_78 = arith.constant 10 : index
    %166 = memref.load %arg1[%c1_77, %c10_78] : memref<8x13xf32, #tpu.memory_space<smem>>
    %c1_79 = arith.constant 1 : index
    %c11_80 = arith.constant 11 : index
    %167 = memref.load %arg1[%c1_79, %c11_80] : memref<8x13xf32, #tpu.memory_space<smem>>
    %c1_81 = arith.constant 1 : index
    %c12_82 = arith.constant 12 : index
    %168 = memref.load %arg1[%c1_81, %c12_82] : memref<8x13xf32, #tpu.memory_space<smem>>
    %169 = vector.broadcast %162 : f32 to vector<8x128xf32>
    %170 = arith.mulf %29, %169 : vector<8x128xf32>
    %171 = vector.broadcast %163 : f32 to vector<8x128xf32>
    %172 = arith.mulf %30, %171 : vector<8x128xf32>
    %173 = arith.addf %170, %172 : vector<8x128xf32>
    %174 = vector.broadcast %164 : f32 to vector<8x128xf32>
    %175 = arith.mulf %31, %174 : vector<8x128xf32>
    %176 = arith.addf %173, %175 : vector<8x128xf32>
    %177 = vector.broadcast %156 : f32 to vector<8x128xf32>
    %178 = arith.mulf %29, %177 : vector<8x128xf32>
    %179 = vector.broadcast %157 : f32 to vector<8x128xf32>
    %180 = arith.mulf %30, %179 : vector<8x128xf32>
    %181 = arith.addf %178, %180 : vector<8x128xf32>
    %182 = vector.broadcast %158 : f32 to vector<8x128xf32>
    %183 = arith.mulf %31, %182 : vector<8x128xf32>
    %184 = arith.addf %181, %183 : vector<8x128xf32>
    %185 = vector.broadcast %159 : f32 to vector<8x128xf32>
    %186 = arith.mulf %29, %185 : vector<8x128xf32>
    %187 = vector.broadcast %160 : f32 to vector<8x128xf32>
    %188 = arith.mulf %30, %187 : vector<8x128xf32>
    %189 = arith.addf %186, %188 : vector<8x128xf32>
    %190 = vector.broadcast %161 : f32 to vector<8x128xf32>
    %191 = arith.mulf %31, %190 : vector<8x128xf32>
    %192 = arith.addf %189, %191 : vector<8x128xf32>
    %193 = arith.mulf %176, %176 : vector<8x128xf32>
    %cst_83 = arith.constant 1.000000e+00 : f32
    %194 = vector.broadcast %cst_83 : f32 to vector<8x128xf32>
    %195 = arith.subf %194, %193 : vector<8x128xf32>
    %cst_84 = arith.constant 1.000000e-24 : f32
    %196 = vector.broadcast %cst_84 : f32 to vector<8x128xf32>
    %197 = arith.maximumf %195, %196 : vector<8x128xf32>
    %198 = tpu.reciprocal %197 {approx = true} : vector<8x128xf32> -> vector<8x128xf32>
    %199 = arith.mulf %197, %198 : vector<8x128xf32>
    %cst_85 = arith.constant 2.000000e+00 : f32
    %200 = vector.broadcast %cst_85 : f32 to vector<8x128xf32>
    %201 = arith.subf %200, %199 : vector<8x128xf32>
    %202 = arith.mulf %198, %201 : vector<8x128xf32>
    %203 = arith.mulf %184, %184 : vector<8x128xf32>
    %204 = vector.broadcast %165 : f32 to vector<8x128xf32>
    %205 = arith.mulf %203, %204 : vector<8x128xf32>
    %206 = arith.mulf %192, %192 : vector<8x128xf32>
    %207 = vector.broadcast %166 : f32 to vector<8x128xf32>
    %208 = arith.mulf %206, %207 : vector<8x128xf32>
    %209 = arith.addf %205, %208 : vector<8x128xf32>
    %210 = arith.mulf %209, %202 : vector<8x128xf32>
    %cst_86 = arith.constant -0.999998986 : f32
    %cst_87 = arith.constant 0.999998986 : f32
    %211 = vector.broadcast %cst_86 : f32 to vector<8x128xf32>
    %212 = arith.maximumf %211, %176 : vector<8x128xf32>
    %213 = vector.broadcast %cst_87 : f32 to vector<8x128xf32>
    %214 = arith.minimumf %213, %212 : vector<8x128xf32>
    %215 = math.absf %214 : vector<8x128xf32>
    %cst_88 = arith.constant -0.0012624911 : f32
    %216 = vector.broadcast %cst_88 : f32 to vector<8x128xf32>
    %217 = arith.mulf %216, %215 : vector<8x128xf32>
    %cst_89 = arith.constant 6.670090e-03 : f32
    %218 = vector.broadcast %cst_89 : f32 to vector<8x128xf32>
    %219 = arith.addf %217, %218 : vector<8x128xf32>
    %220 = arith.mulf %219, %215 : vector<8x128xf32>
    %cst_90 = arith.constant -0.0170881264 : f32
    %221 = vector.broadcast %cst_90 : f32 to vector<8x128xf32>
    %222 = arith.addf %220, %221 : vector<8x128xf32>
    %223 = arith.mulf %222, %215 : vector<8x128xf32>
    %cst_91 = arith.constant 0.0308918804 : f32
    %224 = vector.broadcast %cst_91 : f32 to vector<8x128xf32>
    %225 = arith.addf %223, %224 : vector<8x128xf32>
    %226 = arith.mulf %225, %215 : vector<8x128xf32>
    %cst_92 = arith.constant -0.0501743034 : f32
    %227 = vector.broadcast %cst_92 : f32 to vector<8x128xf32>
    %228 = arith.addf %226, %227 : vector<8x128xf32>
    %229 = arith.mulf %228, %215 : vector<8x128xf32>
    %cst_93 = arith.constant 0.0889789909 : f32
    %230 = vector.broadcast %cst_93 : f32 to vector<8x128xf32>
    %231 = arith.addf %229, %230 : vector<8x128xf32>
    %232 = arith.mulf %231, %215 : vector<8x128xf32>
    %cst_94 = arith.constant -0.214598805 : f32
    %233 = vector.broadcast %cst_94 : f32 to vector<8x128xf32>
    %234 = arith.addf %232, %233 : vector<8x128xf32>
    %235 = arith.mulf %234, %215 : vector<8x128xf32>
    %cst_95 = arith.constant 1.57079625 : f32
    %236 = vector.broadcast %cst_95 : f32 to vector<8x128xf32>
    %237 = arith.addf %235, %236 : vector<8x128xf32>
    %cst_96 = arith.constant 1.000000e+00 : f32
    %238 = vector.broadcast %cst_96 : f32 to vector<8x128xf32>
    %239 = arith.subf %238, %215 : vector<8x128xf32>
    %cst_97 = arith.constant 0.000000e+00 : f32
    %240 = vector.broadcast %cst_97 : f32 to vector<8x128xf32>
    %241 = arith.maximumf %239, %240 : vector<8x128xf32>
    %242 = math.sqrt %241 : vector<8x128xf32>
    %243 = arith.mulf %237, %242 : vector<8x128xf32>
    %cst_98 = arith.constant 0.000000e+00 : f32
    %244 = vector.broadcast %cst_98 : f32 to vector<8x128xf32>
    %245 = arith.cmpf olt, %214, %244 : vector<8x128xf32>
    %cst_99 = arith.constant 3.14159274 : f32
    %246 = vector.broadcast %cst_99 : f32 to vector<8x128xf32>
    %247 = arith.subf %246, %243 : vector<8x128xf32>
    %248 = arith.select %245, %247, %243 : vector<8x128xi1>, vector<8x128xf32>
    %249 = arith.mulf %248, %248 : vector<8x128xf32>
    %250 = arith.mulf %249, %210 : vector<8x128xf32>
    %251 = vector.broadcast %167 : f32 to vector<8x128xf32>
    %252 = arith.mulf %250, %251 : vector<8x128xf32>
    %253 = math.exp %252 : vector<8x128xf32>
    %254 = vector.broadcast %168 : f32 to vector<8x128xf32>
    %255 = arith.mulf %253, %254 : vector<8x128xf32>
    %c1_100 = arith.constant 1 : index
    %256 = arith.index_cast %c0_i32 : i32 to index
    %c0_101 = arith.constant 0 : index
    %c0_102 = arith.constant 0 : index
    %257 = vector.load %arg4[%c1_100, %256, %c0_101, %c0_102] : memref<8x1x8x128xf32, #tpu.memory_space<vmem>>, vector<1x1x8x128xf32>
    %258 = vector.shape_cast %257 : vector<1x1x8x128xf32> to vector<8x128xf32>
    %259 = arith.mulf %258, %255 : vector<8x128xf32>
    %260 = arith.addf %155, %259 : vector<8x128xf32>
    %c2_103 = arith.constant 2 : index
    %c0_104 = arith.constant 0 : index
    %261 = memref.load %arg1[%c2_103, %c0_104] : memref<8x13xf32, #tpu.memory_space<smem>>
    %c2_105 = arith.constant 2 : index
    %c1_106 = arith.constant 1 : index
    %262 = memref.load %arg1[%c2_105, %c1_106] : memref<8x13xf32, #tpu.memory_space<smem>>
    %c2_107 = arith.constant 2 : index
    %c2_108 = arith.constant 2 : index
    %263 = memref.load %arg1[%c2_107, %c2_108] : memref<8x13xf32, #tpu.memory_space<smem>>
    %c2_109 = arith.constant 2 : index
    %c3_110 = arith.constant 3 : index
    %264 = memref.load %arg1[%c2_109, %c3_110] : memref<8x13xf32, #tpu.memory_space<smem>>
    %c2_111 = arith.constant 2 : index
    %c4_112 = arith.constant 4 : index
    %265 = memref.load %arg1[%c2_111, %c4_112] : memref<8x13xf32, #tpu.memory_space<smem>>
    %c2_113 = arith.constant 2 : index
    %c5_114 = arith.constant 5 : index
    %266 = memref.load %arg1[%c2_113, %c5_114] : memref<8x13xf32, #tpu.memory_space<smem>>
    %c2_115 = arith.constant 2 : index
    %c6_116 = arith.constant 6 : index
    %267 = memref.load %arg1[%c2_115, %c6_116] : memref<8x13xf32, #tpu.memory_space<smem>>
    %c2_117 = arith.constant 2 : index
    %c7_118 = arith.constant 7 : index
    %268 = memref.load %arg1[%c2_117, %c7_118] : memref<8x13xf32, #tpu.memory_space<smem>>
    %c2_119 = arith.constant 2 : index
    %c8_120 = arith.constant 8 : index
    %269 = memref.load %arg1[%c2_119, %c8_120] : memref<8x13xf32, #tpu.memory_space<smem>>
    %c2_121 = arith.constant 2 : index
    %c9_122 = arith.constant 9 : index
    %270 = memref.load %arg1[%c2_121, %c9_122] : memref<8x13xf32, #tpu.memory_space<smem>>
    %c2_123 = arith.constant 2 : index
    %c10_124 = arith.constant 10 : index
    %271 = memref.load %arg1[%c2_123, %c10_124] : memref<8x13xf32, #tpu.memory_space<smem>>
    %c2_125 = arith.constant 2 : index
    %c11_126 = arith.constant 11 : index
    %272 = memref.load %arg1[%c2_125, %c11_126] : memref<8x13xf32, #tpu.memory_space<smem>>
    %c2_127 = arith.constant 2 : index
    %c12_128 = arith.constant 12 : index
    %273 = memref.load %arg1[%c2_127, %c12_128] : memref<8x13xf32, #tpu.memory_space<smem>>
    %274 = vector.broadcast %267 : f32 to vector<8x128xf32>
    %275 = arith.mulf %29, %274 : vector<8x128xf32>
    %276 = vector.broadcast %268 : f32 to vector<8x128xf32>
    %277 = arith.mulf %30, %276 : vector<8x128xf32>
    %278 = arith.addf %275, %277 : vector<8x128xf32>
    %279 = vector.broadcast %269 : f32 to vector<8x128xf32>
    %280 = arith.mulf %31, %279 : vector<8x128xf32>
    %281 = arith.addf %278, %280 : vector<8x128xf32>
    %282 = vector.broadcast %261 : f32 to vector<8x128xf32>
    %283 = arith.mulf %29, %282 : vector<8x128xf32>
    %284 = vector.broadcast %262 : f32 to vector<8x128xf32>
    %285 = arith.mulf %30, %284 : vector<8x128xf32>
    %286 = arith.addf %283, %285 : vector<8x128xf32>
    %287 = vector.broadcast %263 : f32 to vector<8x128xf32>
    %288 = arith.mulf %31, %287 : vector<8x128xf32>
    %289 = arith.addf %286, %288 : vector<8x128xf32>
    %290 = vector.broadcast %264 : f32 to vector<8x128xf32>
    %291 = arith.mulf %29, %290 : vector<8x128xf32>
    %292 = vector.broadcast %265 : f32 to vector<8x128xf32>
    %293 = arith.mulf %30, %292 : vector<8x128xf32>
    %294 = arith.addf %291, %293 : vector<8x128xf32>
    %295 = vector.broadcast %266 : f32 to vector<8x128xf32>
    %296 = arith.mulf %31, %295 : vector<8x128xf32>
    %297 = arith.addf %294, %296 : vector<8x128xf32>
    %298 = arith.mulf %281, %281 : vector<8x128xf32>
    %cst_129 = arith.constant 1.000000e+00 : f32
    %299 = vector.broadcast %cst_129 : f32 to vector<8x128xf32>
    %300 = arith.subf %299, %298 : vector<8x128xf32>
    %cst_130 = arith.constant 1.000000e-24 : f32
    %301 = vector.broadcast %cst_130 : f32 to vector<8x128xf32>
    %302 = arith.maximumf %300, %301 : vector<8x128xf32>
    %303 = tpu.reciprocal %302 {approx = true} : vector<8x128xf32> -> vector<8x128xf32>
    %304 = arith.mulf %302, %303 : vector<8x128xf32>
    %cst_131 = arith.constant 2.000000e+00 : f32
    %305 = vector.broadcast %cst_131 : f32 to vector<8x128xf32>
    %306 = arith.subf %305, %304 : vector<8x128xf32>
    %307 = arith.mulf %303, %306 : vector<8x128xf32>
    %308 = arith.mulf %289, %289 : vector<8x128xf32>
    %309 = vector.broadcast %270 : f32 to vector<8x128xf32>
    %310 = arith.mulf %308, %309 : vector<8x128xf32>
    %311 = arith.mulf %297, %297 : vector<8x128xf32>
    %312 = vector.broadcast %271 : f32 to vector<8x128xf32>
    %313 = arith.mulf %311, %312 : vector<8x128xf32>
    %314 = arith.addf %310, %313 : vector<8x128xf32>
    %315 = arith.mulf %314, %307 : vector<8x128xf32>
    %cst_132 = arith.constant -0.999998986 : f32
    %cst_133 = arith.constant 0.999998986 : f32
    %316 = vector.broadcast %cst_132 : f32 to vector<8x128xf32>
    %317 = arith.maximumf %316, %281 : vector<8x128xf32>
    %318 = vector.broadcast %cst_133 : f32 to vector<8x128xf32>
    %319 = arith.minimumf %318, %317 : vector<8x128xf32>
    %320 = math.absf %319 : vector<8x128xf32>
    %cst_134 = arith.constant -0.0012624911 : f32
    %321 = vector.broadcast %cst_134 : f32 to vector<8x128xf32>
    %322 = arith.mulf %321, %320 : vector<8x128xf32>
    %cst_135 = arith.constant 6.670090e-03 : f32
    %323 = vector.broadcast %cst_135 : f32 to vector<8x128xf32>
    %324 = arith.addf %322, %323 : vector<8x128xf32>
    %325 = arith.mulf %324, %320 : vector<8x128xf32>
    %cst_136 = arith.constant -0.0170881264 : f32
    %326 = vector.broadcast %cst_136 : f32 to vector<8x128xf32>
    %327 = arith.addf %325, %326 : vector<8x128xf32>
    %328 = arith.mulf %327, %320 : vector<8x128xf32>
    %cst_137 = arith.constant 0.0308918804 : f32
    %329 = vector.broadcast %cst_137 : f32 to vector<8x128xf32>
    %330 = arith.addf %328, %329 : vector<8x128xf32>
    %331 = arith.mulf %330, %320 : vector<8x128xf32>
    %cst_138 = arith.constant -0.0501743034 : f32
    %332 = vector.broadcast %cst_138 : f32 to vector<8x128xf32>
    %333 = arith.addf %331, %332 : vector<8x128xf32>
    %334 = arith.mulf %333, %320 : vector<8x128xf32>
    %cst_139 = arith.constant 0.0889789909 : f32
    %335 = vector.broadcast %cst_139 : f32 to vector<8x128xf32>
    %336 = arith.addf %334, %335 : vector<8x128xf32>
    %337 = arith.mulf %336, %320 : vector<8x128xf32>
    %cst_140 = arith.constant -0.214598805 : f32
    %338 = vector.broadcast %cst_140 : f32 to vector<8x128xf32>
    %339 = arith.addf %337, %338 : vector<8x128xf32>
    %340 = arith.mulf %339, %320 : vector<8x128xf32>
    %cst_141 = arith.constant 1.57079625 : f32
    %341 = vector.broadcast %cst_141 : f32 to vector<8x128xf32>
    %342 = arith.addf %340, %341 : vector<8x128xf32>
    %cst_142 = arith.constant 1.000000e+00 : f32
    %343 = vector.broadcast %cst_142 : f32 to vector<8x128xf32>
    %344 = arith.subf %343, %320 : vector<8x128xf32>
    %cst_143 = arith.constant 0.000000e+00 : f32
    %345 = vector.broadcast %cst_143 : f32 to vector<8x128xf32>
    %346 = arith.maximumf %344, %345 : vector<8x128xf32>
    %347 = math.sqrt %346 : vector<8x128xf32>
    %348 = arith.mulf %342, %347 : vector<8x128xf32>
    %cst_144 = arith.constant 0.000000e+00 : f32
    %349 = vector.broadcast %cst_144 : f32 to vector<8x128xf32>
    %350 = arith.cmpf olt, %319, %349 : vector<8x128xf32>
    %cst_145 = arith.constant 3.14159274 : f32
    %351 = vector.broadcast %cst_145 : f32 to vector<8x128xf32>
    %352 = arith.subf %351, %348 : vector<8x128xf32>
    %353 = arith.select %350, %352, %348 : vector<8x128xi1>, vector<8x128xf32>
    %354 = arith.mulf %353, %353 : vector<8x128xf32>
    %355 = arith.mulf %354, %315 : vector<8x128xf32>
    %356 = vector.broadcast %272 : f32 to vector<8x128xf32>
    %357 = arith.mulf %355, %356 : vector<8x128xf32>
    %358 = math.exp %357 : vector<8x128xf32>
    %359 = vector.broadcast %273 : f32 to vector<8x128xf32>
    %360 = arith.mulf %358, %359 : vector<8x128xf32>
    %c2_146 = arith.constant 2 : index
    %361 = arith.index_cast %c0_i32 : i32 to index
    %c0_147 = arith.constant 0 : index
    %c0_148 = arith.constant 0 : index
    %362 = vector.load %arg4[%c2_146, %361, %c0_147, %c0_148] : memref<8x1x8x128xf32, #tpu.memory_space<vmem>>, vector<1x1x8x128xf32>
    %363 = vector.shape_cast %362 : vector<1x1x8x128xf32> to vector<8x128xf32>
    %364 = arith.mulf %363, %360 : vector<8x128xf32>
    %365 = arith.addf %260, %364 : vector<8x128xf32>
    %c3_149 = arith.constant 3 : index
    %c0_150 = arith.constant 0 : index
    %366 = memref.load %arg1[%c3_149, %c0_150] : memref<8x13xf32, #tpu.memory_space<smem>>
    %c3_151 = arith.constant 3 : index
    %c1_152 = arith.constant 1 : index
    %367 = memref.load %arg1[%c3_151, %c1_152] : memref<8x13xf32, #tpu.memory_space<smem>>
    %c3_153 = arith.constant 3 : index
    %c2_154 = arith.constant 2 : index
    %368 = memref.load %arg1[%c3_153, %c2_154] : memref<8x13xf32, #tpu.memory_space<smem>>
    %c3_155 = arith.constant 3 : index
    %c3_156 = arith.constant 3 : index
    %369 = memref.load %arg1[%c3_155, %c3_156] : memref<8x13xf32, #tpu.memory_space<smem>>
    %c3_157 = arith.constant 3 : index
    %c4_158 = arith.constant 4 : index
    %370 = memref.load %arg1[%c3_157, %c4_158] : memref<8x13xf32, #tpu.memory_space<smem>>
    %c3_159 = arith.constant 3 : index
    %c5_160 = arith.constant 5 : index
    %371 = memref.load %arg1[%c3_159, %c5_160] : memref<8x13xf32, #tpu.memory_space<smem>>
    %c3_161 = arith.constant 3 : index
    %c6_162 = arith.constant 6 : index
    %372 = memref.load %arg1[%c3_161, %c6_162] : memref<8x13xf32, #tpu.memory_space<smem>>
    %c3_163 = arith.constant 3 : index
    %c7_164 = arith.constant 7 : index
    %373 = memref.load %arg1[%c3_163, %c7_164] : memref<8x13xf32, #tpu.memory_space<smem>>
    %c3_165 = arith.constant 3 : index
    %c8_166 = arith.constant 8 : index
    %374 = memref.load %arg1[%c3_165, %c8_166] : memref<8x13xf32, #tpu.memory_space<smem>>
    %c3_167 = arith.constant 3 : index
    %c9_168 = arith.constant 9 : index
    %375 = memref.load %arg1[%c3_167, %c9_168] : memref<8x13xf32, #tpu.memory_space<smem>>
    %c3_169 = arith.constant 3 : index
    %c10_170 = arith.constant 10 : index
    %376 = memref.load %arg1[%c3_169, %c10_170] : memref<8x13xf32, #tpu.memory_space<smem>>
    %c3_171 = arith.constant 3 : index
    %c11_172 = arith.constant 11 : index
    %377 = memref.load %arg1[%c3_171, %c11_172] : memref<8x13xf32, #tpu.memory_space<smem>>
    %c3_173 = arith.constant 3 : index
    %c12_174 = arith.constant 12 : index
    %378 = memref.load %arg1[%c3_173, %c12_174] : memref<8x13xf32, #tpu.memory_space<smem>>
    %379 = vector.broadcast %372 : f32 to vector<8x128xf32>
    %380 = arith.mulf %29, %379 : vector<8x128xf32>
    %381 = vector.broadcast %373 : f32 to vector<8x128xf32>
    %382 = arith.mulf %30, %381 : vector<8x128xf32>
    %383 = arith.addf %380, %382 : vector<8x128xf32>
    %384 = vector.broadcast %374 : f32 to vector<8x128xf32>
    %385 = arith.mulf %31, %384 : vector<8x128xf32>
    %386 = arith.addf %383, %385 : vector<8x128xf32>
    %387 = vector.broadcast %366 : f32 to vector<8x128xf32>
    %388 = arith.mulf %29, %387 : vector<8x128xf32>
    %389 = vector.broadcast %367 : f32 to vector<8x128xf32>
    %390 = arith.mulf %30, %389 : vector<8x128xf32>
    %391 = arith.addf %388, %390 : vector<8x128xf32>
    %392 = vector.broadcast %368 : f32 to vector<8x128xf32>
    %393 = arith.mulf %31, %392 : vector<8x128xf32>
    %394 = arith.addf %391, %393 : vector<8x128xf32>
    %395 = vector.broadcast %369 : f32 to vector<8x128xf32>
    %396 = arith.mulf %29, %395 : vector<8x128xf32>
    %397 = vector.broadcast %370 : f32 to vector<8x128xf32>
    %398 = arith.mulf %30, %397 : vector<8x128xf32>
    %399 = arith.addf %396, %398 : vector<8x128xf32>
    %400 = vector.broadcast %371 : f32 to vector<8x128xf32>
    %401 = arith.mulf %31, %400 : vector<8x128xf32>
    %402 = arith.addf %399, %401 : vector<8x128xf32>
    %403 = arith.mulf %386, %386 : vector<8x128xf32>
    %cst_175 = arith.constant 1.000000e+00 : f32
    %404 = vector.broadcast %cst_175 : f32 to vector<8x128xf32>
    %405 = arith.subf %404, %403 : vector<8x128xf32>
    %cst_176 = arith.constant 1.000000e-24 : f32
    %406 = vector.broadcast %cst_176 : f32 to vector<8x128xf32>
    %407 = arith.maximumf %405, %406 : vector<8x128xf32>
    %408 = tpu.reciprocal %407 {approx = true} : vector<8x128xf32> -> vector<8x128xf32>
    %409 = arith.mulf %407, %408 : vector<8x128xf32>
    %cst_177 = arith.constant 2.000000e+00 : f32
    %410 = vector.broadcast %cst_177 : f32 to vector<8x128xf32>
    %411 = arith.subf %410, %409 : vector<8x128xf32>
    %412 = arith.mulf %408, %411 : vector<8x128xf32>
    %413 = arith.mulf %394, %394 : vector<8x128xf32>
    %414 = vector.broadcast %375 : f32 to vector<8x128xf32>
    %415 = arith.mulf %413, %414 : vector<8x128xf32>
    %416 = arith.mulf %402, %402 : vector<8x128xf32>
    %417 = vector.broadcast %376 : f32 to vector<8x128xf32>
    %418 = arith.mulf %416, %417 : vector<8x128xf32>
    %419 = arith.addf %415, %418 : vector<8x128xf32>
    %420 = arith.mulf %419, %412 : vector<8x128xf32>
    %cst_178 = arith.constant -0.999998986 : f32
    %cst_179 = arith.constant 0.999998986 : f32
    %421 = vector.broadcast %cst_178 : f32 to vector<8x128xf32>
    %422 = arith.maximumf %421, %386 : vector<8x128xf32>
    %423 = vector.broadcast %cst_179 : f32 to vector<8x128xf32>
    %424 = arith.minimumf %423, %422 : vector<8x128xf32>
    %425 = math.absf %424 : vector<8x128xf32>
    %cst_180 = arith.constant -0.0012624911 : f32
    %426 = vector.broadcast %cst_180 : f32 to vector<8x128xf32>
    %427 = arith.mulf %426, %425 : vector<8x128xf32>
    %cst_181 = arith.constant 6.670090e-03 : f32
    %428 = vector.broadcast %cst_181 : f32 to vector<8x128xf32>
    %429 = arith.addf %427, %428 : vector<8x128xf32>
    %430 = arith.mulf %429, %425 : vector<8x128xf32>
    %cst_182 = arith.constant -0.0170881264 : f32
    %431 = vector.broadcast %cst_182 : f32 to vector<8x128xf32>
    %432 = arith.addf %430, %431 : vector<8x128xf32>
    %433 = arith.mulf %432, %425 : vector<8x128xf32>
    %cst_183 = arith.constant 0.0308918804 : f32
    %434 = vector.broadcast %cst_183 : f32 to vector<8x128xf32>
    %435 = arith.addf %433, %434 : vector<8x128xf32>
    %436 = arith.mulf %435, %425 : vector<8x128xf32>
    %cst_184 = arith.constant -0.0501743034 : f32
    %437 = vector.broadcast %cst_184 : f32 to vector<8x128xf32>
    %438 = arith.addf %436, %437 : vector<8x128xf32>
    %439 = arith.mulf %438, %425 : vector<8x128xf32>
    %cst_185 = arith.constant 0.0889789909 : f32
    %440 = vector.broadcast %cst_185 : f32 to vector<8x128xf32>
    %441 = arith.addf %439, %440 : vector<8x128xf32>
    %442 = arith.mulf %441, %425 : vector<8x128xf32>
    %cst_186 = arith.constant -0.214598805 : f32
    %443 = vector.broadcast %cst_186 : f32 to vector<8x128xf32>
    %444 = arith.addf %442, %443 : vector<8x128xf32>
    %445 = arith.mulf %444, %425 : vector<8x128xf32>
    %cst_187 = arith.constant 1.57079625 : f32
    %446 = vector.broadcast %cst_187 : f32 to vector<8x128xf32>
    %447 = arith.addf %445, %446 : vector<8x128xf32>
    %cst_188 = arith.constant 1.000000e+00 : f32
    %448 = vector.broadcast %cst_188 : f32 to vector<8x128xf32>
    %449 = arith.subf %448, %425 : vector<8x128xf32>
    %cst_189 = arith.constant 0.000000e+00 : f32
    %450 = vector.broadcast %cst_189 : f32 to vector<8x128xf32>
    %451 = arith.maximumf %449, %450 : vector<8x128xf32>
    %452 = math.sqrt %451 : vector<8x128xf32>
    %453 = arith.mulf %447, %452 : vector<8x128xf32>
    %cst_190 = arith.constant 0.000000e+00 : f32
    %454 = vector.broadcast %cst_190 : f32 to vector<8x128xf32>
    %455 = arith.cmpf olt, %424, %454 : vector<8x128xf32>
    %cst_191 = arith.constant 3.14159274 : f32
    %456 = vector.broadcast %cst_191 : f32 to vector<8x128xf32>
    %457 = arith.subf %456, %453 : vector<8x128xf32>
    %458 = arith.select %455, %457, %453 : vector<8x128xi1>, vector<8x128xf32>
    %459 = arith.mulf %458, %458 : vector<8x128xf32>
    %460 = arith.mulf %459, %420 : vector<8x128xf32>
    %461 = vector.broadcast %377 : f32 to vector<8x128xf32>
    %462 = arith.mulf %460, %461 : vector<8x128xf32>
    %463 = math.exp %462 : vector<8x128xf32>
    %464 = vector.broadcast %378 : f32 to vector<8x128xf32>
    %465 = arith.mulf %463, %464 : vector<8x128xf32>
    %c3_192 = arith.constant 3 : index
    %466 = arith.index_cast %c0_i32 : i32 to index
    %c0_193 = arith.constant 0 : index
    %c0_194 = arith.constant 0 : index
    %467 = vector.load %arg4[%c3_192, %466, %c0_193, %c0_194] : memref<8x1x8x128xf32, #tpu.memory_space<vmem>>, vector<1x1x8x128xf32>
    %468 = vector.shape_cast %467 : vector<1x1x8x128xf32> to vector<8x128xf32>
    %469 = arith.mulf %468, %465 : vector<8x128xf32>
    %470 = arith.addf %365, %469 : vector<8x128xf32>
    %c4_195 = arith.constant 4 : index
    %c0_196 = arith.constant 0 : index
    %471 = memref.load %arg1[%c4_195, %c0_196] : memref<8x13xf32, #tpu.memory_space<smem>>
    %c4_197 = arith.constant 4 : index
    %c1_198 = arith.constant 1 : index
    %472 = memref.load %arg1[%c4_197, %c1_198] : memref<8x13xf32, #tpu.memory_space<smem>>
    %c4_199 = arith.constant 4 : index
    %c2_200 = arith.constant 2 : index
    %473 = memref.load %arg1[%c4_199, %c2_200] : memref<8x13xf32, #tpu.memory_space<smem>>
    %c4_201 = arith.constant 4 : index
    %c3_202 = arith.constant 3 : index
    %474 = memref.load %arg1[%c4_201, %c3_202] : memref<8x13xf32, #tpu.memory_space<smem>>
    %c4_203 = arith.constant 4 : index
    %c4_204 = arith.constant 4 : index
    %475 = memref.load %arg1[%c4_203, %c4_204] : memref<8x13xf32, #tpu.memory_space<smem>>
    %c4_205 = arith.constant 4 : index
    %c5_206 = arith.constant 5 : index
    %476 = memref.load %arg1[%c4_205, %c5_206] : memref<8x13xf32, #tpu.memory_space<smem>>
    %c4_207 = arith.constant 4 : index
    %c6_208 = arith.constant 6 : index
    %477 = memref.load %arg1[%c4_207, %c6_208] : memref<8x13xf32, #tpu.memory_space<smem>>
    %c4_209 = arith.constant 4 : index
    %c7_210 = arith.constant 7 : index
    %478 = memref.load %arg1[%c4_209, %c7_210] : memref<8x13xf32, #tpu.memory_space<smem>>
    %c4_211 = arith.constant 4 : index
    %c8_212 = arith.constant 8 : index
    %479 = memref.load %arg1[%c4_211, %c8_212] : memref<8x13xf32, #tpu.memory_space<smem>>
    %c4_213 = arith.constant 4 : index
    %c9_214 = arith.constant 9 : index
    %480 = memref.load %arg1[%c4_213, %c9_214] : memref<8x13xf32, #tpu.memory_space<smem>>
    %c4_215 = arith.constant 4 : index
    %c10_216 = arith.constant 10 : index
    %481 = memref.load %arg1[%c4_215, %c10_216] : memref<8x13xf32, #tpu.memory_space<smem>>
    %c4_217 = arith.constant 4 : index
    %c11_218 = arith.constant 11 : index
    %482 = memref.load %arg1[%c4_217, %c11_218] : memref<8x13xf32, #tpu.memory_space<smem>>
    %c4_219 = arith.constant 4 : index
    %c12_220 = arith.constant 12 : index
    %483 = memref.load %arg1[%c4_219, %c12_220] : memref<8x13xf32, #tpu.memory_space<smem>>
    %484 = vector.broadcast %477 : f32 to vector<8x128xf32>
    %485 = arith.mulf %29, %484 : vector<8x128xf32>
    %486 = vector.broadcast %478 : f32 to vector<8x128xf32>
    %487 = arith.mulf %30, %486 : vector<8x128xf32>
    %488 = arith.addf %485, %487 : vector<8x128xf32>
    %489 = vector.broadcast %479 : f32 to vector<8x128xf32>
    %490 = arith.mulf %31, %489 : vector<8x128xf32>
    %491 = arith.addf %488, %490 : vector<8x128xf32>
    %492 = vector.broadcast %471 : f32 to vector<8x128xf32>
    %493 = arith.mulf %29, %492 : vector<8x128xf32>
    %494 = vector.broadcast %472 : f32 to vector<8x128xf32>
    %495 = arith.mulf %30, %494 : vector<8x128xf32>
    %496 = arith.addf %493, %495 : vector<8x128xf32>
    %497 = vector.broadcast %473 : f32 to vector<8x128xf32>
    %498 = arith.mulf %31, %497 : vector<8x128xf32>
    %499 = arith.addf %496, %498 : vector<8x128xf32>
    %500 = vector.broadcast %474 : f32 to vector<8x128xf32>
    %501 = arith.mulf %29, %500 : vector<8x128xf32>
    %502 = vector.broadcast %475 : f32 to vector<8x128xf32>
    %503 = arith.mulf %30, %502 : vector<8x128xf32>
    %504 = arith.addf %501, %503 : vector<8x128xf32>
    %505 = vector.broadcast %476 : f32 to vector<8x128xf32>
    %506 = arith.mulf %31, %505 : vector<8x128xf32>
    %507 = arith.addf %504, %506 : vector<8x128xf32>
    %508 = arith.mulf %491, %491 : vector<8x128xf32>
    %cst_221 = arith.constant 1.000000e+00 : f32
    %509 = vector.broadcast %cst_221 : f32 to vector<8x128xf32>
    %510 = arith.subf %509, %508 : vector<8x128xf32>
    %cst_222 = arith.constant 1.000000e-24 : f32
    %511 = vector.broadcast %cst_222 : f32 to vector<8x128xf32>
    %512 = arith.maximumf %510, %511 : vector<8x128xf32>
    %513 = tpu.reciprocal %512 {approx = true} : vector<8x128xf32> -> vector<8x128xf32>
    %514 = arith.mulf %512, %513 : vector<8x128xf32>
    %cst_223 = arith.constant 2.000000e+00 : f32
    %515 = vector.broadcast %cst_223 : f32 to vector<8x128xf32>
    %516 = arith.subf %515, %514 : vector<8x128xf32>
    %517 = arith.mulf %513, %516 : vector<8x128xf32>
    %518 = arith.mulf %499, %499 : vector<8x128xf32>
    %519 = vector.broadcast %480 : f32 to vector<8x128xf32>
    %520 = arith.mulf %518, %519 : vector<8x128xf32>
    %521 = arith.mulf %507, %507 : vector<8x128xf32>
    %522 = vector.broadcast %481 : f32 to vector<8x128xf32>
    %523 = arith.mulf %521, %522 : vector<8x128xf32>
    %524 = arith.addf %520, %523 : vector<8x128xf32>
    %525 = arith.mulf %524, %517 : vector<8x128xf32>
    %cst_224 = arith.constant -0.999998986 : f32
    %cst_225 = arith.constant 0.999998986 : f32
    %526 = vector.broadcast %cst_224 : f32 to vector<8x128xf32>
    %527 = arith.maximumf %526, %491 : vector<8x128xf32>
    %528 = vector.broadcast %cst_225 : f32 to vector<8x128xf32>
    %529 = arith.minimumf %528, %527 : vector<8x128xf32>
    %530 = math.absf %529 : vector<8x128xf32>
    %cst_226 = arith.constant -0.0012624911 : f32
    %531 = vector.broadcast %cst_226 : f32 to vector<8x128xf32>
    %532 = arith.mulf %531, %530 : vector<8x128xf32>
    %cst_227 = arith.constant 6.670090e-03 : f32
    %533 = vector.broadcast %cst_227 : f32 to vector<8x128xf32>
    %534 = arith.addf %532, %533 : vector<8x128xf32>
    %535 = arith.mulf %534, %530 : vector<8x128xf32>
    %cst_228 = arith.constant -0.0170881264 : f32
    %536 = vector.broadcast %cst_228 : f32 to vector<8x128xf32>
    %537 = arith.addf %535, %536 : vector<8x128xf32>
    %538 = arith.mulf %537, %530 : vector<8x128xf32>
    %cst_229 = arith.constant 0.0308918804 : f32
    %539 = vector.broadcast %cst_229 : f32 to vector<8x128xf32>
    %540 = arith.addf %538, %539 : vector<8x128xf32>
    %541 = arith.mulf %540, %530 : vector<8x128xf32>
    %cst_230 = arith.constant -0.0501743034 : f32
    %542 = vector.broadcast %cst_230 : f32 to vector<8x128xf32>
    %543 = arith.addf %541, %542 : vector<8x128xf32>
    %544 = arith.mulf %543, %530 : vector<8x128xf32>
    %cst_231 = arith.constant 0.0889789909 : f32
    %545 = vector.broadcast %cst_231 : f32 to vector<8x128xf32>
    %546 = arith.addf %544, %545 : vector<8x128xf32>
    %547 = arith.mulf %546, %530 : vector<8x128xf32>
    %cst_232 = arith.constant -0.214598805 : f32
    %548 = vector.broadcast %cst_232 : f32 to vector<8x128xf32>
    %549 = arith.addf %547, %548 : vector<8x128xf32>
    %550 = arith.mulf %549, %530 : vector<8x128xf32>
    %cst_233 = arith.constant 1.57079625 : f32
    %551 = vector.broadcast %cst_233 : f32 to vector<8x128xf32>
    %552 = arith.addf %550, %551 : vector<8x128xf32>
    %cst_234 = arith.constant 1.000000e+00 : f32
    %553 = vector.broadcast %cst_234 : f32 to vector<8x128xf32>
    %554 = arith.subf %553, %530 : vector<8x128xf32>
    %cst_235 = arith.constant 0.000000e+00 : f32
    %555 = vector.broadcast %cst_235 : f32 to vector<8x128xf32>
    %556 = arith.maximumf %554, %555 : vector<8x128xf32>
    %557 = math.sqrt %556 : vector<8x128xf32>
    %558 = arith.mulf %552, %557 : vector<8x128xf32>
    %cst_236 = arith.constant 0.000000e+00 : f32
    %559 = vector.broadcast %cst_236 : f32 to vector<8x128xf32>
    %560 = arith.cmpf olt, %529, %559 : vector<8x128xf32>
    %cst_237 = arith.constant 3.14159274 : f32
    %561 = vector.broadcast %cst_237 : f32 to vector<8x128xf32>
    %562 = arith.subf %561, %558 : vector<8x128xf32>
    %563 = arith.select %560, %562, %558 : vector<8x128xi1>, vector<8x128xf32>
    %564 = arith.mulf %563, %563 : vector<8x128xf32>
    %565 = arith.mulf %564, %525 : vector<8x128xf32>
    %566 = vector.broadcast %482 : f32 to vector<8x128xf32>
    %567 = arith.mulf %565, %566 : vector<8x128xf32>
    %568 = math.exp %567 : vector<8x128xf32>
    %569 = vector.broadcast %483 : f32 to vector<8x128xf32>
    %570 = arith.mulf %568, %569 : vector<8x128xf32>
    %c4_238 = arith.constant 4 : index
    %571 = arith.index_cast %c0_i32 : i32 to index
    %c0_239 = arith.constant 0 : index
    %c0_240 = arith.constant 0 : index
    %572 = vector.load %arg4[%c4_238, %571, %c0_239, %c0_240] : memref<8x1x8x128xf32, #tpu.memory_space<vmem>>, vector<1x1x8x128xf32>
    %573 = vector.shape_cast %572 : vector<1x1x8x128xf32> to vector<8x128xf32>
    %574 = arith.mulf %573, %570 : vector<8x128xf32>
    %575 = arith.addf %470, %574 : vector<8x128xf32>
    %c5_241 = arith.constant 5 : index
    %c0_242 = arith.constant 0 : index
    %576 = memref.load %arg1[%c5_241, %c0_242] : memref<8x13xf32, #tpu.memory_space<smem>>
    %c5_243 = arith.constant 5 : index
    %c1_244 = arith.constant 1 : index
    %577 = memref.load %arg1[%c5_243, %c1_244] : memref<8x13xf32, #tpu.memory_space<smem>>
    %c5_245 = arith.constant 5 : index
    %c2_246 = arith.constant 2 : index
    %578 = memref.load %arg1[%c5_245, %c2_246] : memref<8x13xf32, #tpu.memory_space<smem>>
    %c5_247 = arith.constant 5 : index
    %c3_248 = arith.constant 3 : index
    %579 = memref.load %arg1[%c5_247, %c3_248] : memref<8x13xf32, #tpu.memory_space<smem>>
    %c5_249 = arith.constant 5 : index
    %c4_250 = arith.constant 4 : index
    %580 = memref.load %arg1[%c5_249, %c4_250] : memref<8x13xf32, #tpu.memory_space<smem>>
    %c5_251 = arith.constant 5 : index
    %c5_252 = arith.constant 5 : index
    %581 = memref.load %arg1[%c5_251, %c5_252] : memref<8x13xf32, #tpu.memory_space<smem>>
    %c5_253 = arith.constant 5 : index
    %c6_254 = arith.constant 6 : index
    %582 = memref.load %arg1[%c5_253, %c6_254] : memref<8x13xf32, #tpu.memory_space<smem>>
    %c5_255 = arith.constant 5 : index
    %c7_256 = arith.constant 7 : index
    %583 = memref.load %arg1[%c5_255, %c7_256] : memref<8x13xf32, #tpu.memory_space<smem>>
    %c5_257 = arith.constant 5 : index
    %c8_258 = arith.constant 8 : index
    %584 = memref.load %arg1[%c5_257, %c8_258] : memref<8x13xf32, #tpu.memory_space<smem>>
    %c5_259 = arith.constant 5 : index
    %c9_260 = arith.constant 9 : index
    %585 = memref.load %arg1[%c5_259, %c9_260] : memref<8x13xf32, #tpu.memory_space<smem>>
    %c5_261 = arith.constant 5 : index
    %c10_262 = arith.constant 10 : index
    %586 = memref.load %arg1[%c5_261, %c10_262] : memref<8x13xf32, #tpu.memory_space<smem>>
    %c5_263 = arith.constant 5 : index
    %c11_264 = arith.constant 11 : index
    %587 = memref.load %arg1[%c5_263, %c11_264] : memref<8x13xf32, #tpu.memory_space<smem>>
    %c5_265 = arith.constant 5 : index
    %c12_266 = arith.constant 12 : index
    %588 = memref.load %arg1[%c5_265, %c12_266] : memref<8x13xf32, #tpu.memory_space<smem>>
    %589 = vector.broadcast %582 : f32 to vector<8x128xf32>
    %590 = arith.mulf %29, %589 : vector<8x128xf32>
    %591 = vector.broadcast %583 : f32 to vector<8x128xf32>
    %592 = arith.mulf %30, %591 : vector<8x128xf32>
    %593 = arith.addf %590, %592 : vector<8x128xf32>
    %594 = vector.broadcast %584 : f32 to vector<8x128xf32>
    %595 = arith.mulf %31, %594 : vector<8x128xf32>
    %596 = arith.addf %593, %595 : vector<8x128xf32>
    %597 = vector.broadcast %576 : f32 to vector<8x128xf32>
    %598 = arith.mulf %29, %597 : vector<8x128xf32>
    %599 = vector.broadcast %577 : f32 to vector<8x128xf32>
    %600 = arith.mulf %30, %599 : vector<8x128xf32>
    %601 = arith.addf %598, %600 : vector<8x128xf32>
    %602 = vector.broadcast %578 : f32 to vector<8x128xf32>
    %603 = arith.mulf %31, %602 : vector<8x128xf32>
    %604 = arith.addf %601, %603 : vector<8x128xf32>
    %605 = vector.broadcast %579 : f32 to vector<8x128xf32>
    %606 = arith.mulf %29, %605 : vector<8x128xf32>
    %607 = vector.broadcast %580 : f32 to vector<8x128xf32>
    %608 = arith.mulf %30, %607 : vector<8x128xf32>
    %609 = arith.addf %606, %608 : vector<8x128xf32>
    %610 = vector.broadcast %581 : f32 to vector<8x128xf32>
    %611 = arith.mulf %31, %610 : vector<8x128xf32>
    %612 = arith.addf %609, %611 : vector<8x128xf32>
    %613 = arith.mulf %596, %596 : vector<8x128xf32>
    %cst_267 = arith.constant 1.000000e+00 : f32
    %614 = vector.broadcast %cst_267 : f32 to vector<8x128xf32>
    %615 = arith.subf %614, %613 : vector<8x128xf32>
    %cst_268 = arith.constant 1.000000e-24 : f32
    %616 = vector.broadcast %cst_268 : f32 to vector<8x128xf32>
    %617 = arith.maximumf %615, %616 : vector<8x128xf32>
    %618 = tpu.reciprocal %617 {approx = true} : vector<8x128xf32> -> vector<8x128xf32>
    %619 = arith.mulf %617, %618 : vector<8x128xf32>
    %cst_269 = arith.constant 2.000000e+00 : f32
    %620 = vector.broadcast %cst_269 : f32 to vector<8x128xf32>
    %621 = arith.subf %620, %619 : vector<8x128xf32>
    %622 = arith.mulf %618, %621 : vector<8x128xf32>
    %623 = arith.mulf %604, %604 : vector<8x128xf32>
    %624 = vector.broadcast %585 : f32 to vector<8x128xf32>
    %625 = arith.mulf %623, %624 : vector<8x128xf32>
    %626 = arith.mulf %612, %612 : vector<8x128xf32>
    %627 = vector.broadcast %586 : f32 to vector<8x128xf32>
    %628 = arith.mulf %626, %627 : vector<8x128xf32>
    %629 = arith.addf %625, %628 : vector<8x128xf32>
    %630 = arith.mulf %629, %622 : vector<8x128xf32>
    %cst_270 = arith.constant -0.999998986 : f32
    %cst_271 = arith.constant 0.999998986 : f32
    %631 = vector.broadcast %cst_270 : f32 to vector<8x128xf32>
    %632 = arith.maximumf %631, %596 : vector<8x128xf32>
    %633 = vector.broadcast %cst_271 : f32 to vector<8x128xf32>
    %634 = arith.minimumf %633, %632 : vector<8x128xf32>
    %635 = math.absf %634 : vector<8x128xf32>
    %cst_272 = arith.constant -0.0012624911 : f32
    %636 = vector.broadcast %cst_272 : f32 to vector<8x128xf32>
    %637 = arith.mulf %636, %635 : vector<8x128xf32>
    %cst_273 = arith.constant 6.670090e-03 : f32
    %638 = vector.broadcast %cst_273 : f32 to vector<8x128xf32>
    %639 = arith.addf %637, %638 : vector<8x128xf32>
    %640 = arith.mulf %639, %635 : vector<8x128xf32>
    %cst_274 = arith.constant -0.0170881264 : f32
    %641 = vector.broadcast %cst_274 : f32 to vector<8x128xf32>
    %642 = arith.addf %640, %641 : vector<8x128xf32>
    %643 = arith.mulf %642, %635 : vector<8x128xf32>
    %cst_275 = arith.constant 0.0308918804 : f32
    %644 = vector.broadcast %cst_275 : f32 to vector<8x128xf32>
    %645 = arith.addf %643, %644 : vector<8x128xf32>
    %646 = arith.mulf %645, %635 : vector<8x128xf32>
    %cst_276 = arith.constant -0.0501743034 : f32
    %647 = vector.broadcast %cst_276 : f32 to vector<8x128xf32>
    %648 = arith.addf %646, %647 : vector<8x128xf32>
    %649 = arith.mulf %648, %635 : vector<8x128xf32>
    %cst_277 = arith.constant 0.0889789909 : f32
    %650 = vector.broadcast %cst_277 : f32 to vector<8x128xf32>
    %651 = arith.addf %649, %650 : vector<8x128xf32>
    %652 = arith.mulf %651, %635 : vector<8x128xf32>
    %cst_278 = arith.constant -0.214598805 : f32
    %653 = vector.broadcast %cst_278 : f32 to vector<8x128xf32>
    %654 = arith.addf %652, %653 : vector<8x128xf32>
    %655 = arith.mulf %654, %635 : vector<8x128xf32>
    %cst_279 = arith.constant 1.57079625 : f32
    %656 = vector.broadcast %cst_279 : f32 to vector<8x128xf32>
    %657 = arith.addf %655, %656 : vector<8x128xf32>
    %cst_280 = arith.constant 1.000000e+00 : f32
    %658 = vector.broadcast %cst_280 : f32 to vector<8x128xf32>
    %659 = arith.subf %658, %635 : vector<8x128xf32>
    %cst_281 = arith.constant 0.000000e+00 : f32
    %660 = vector.broadcast %cst_281 : f32 to vector<8x128xf32>
    %661 = arith.maximumf %659, %660 : vector<8x128xf32>
    %662 = math.sqrt %661 : vector<8x128xf32>
    %663 = arith.mulf %657, %662 : vector<8x128xf32>
    %cst_282 = arith.constant 0.000000e+00 : f32
    %664 = vector.broadcast %cst_282 : f32 to vector<8x128xf32>
    %665 = arith.cmpf olt, %634, %664 : vector<8x128xf32>
    %cst_283 = arith.constant 3.14159274 : f32
    %666 = vector.broadcast %cst_283 : f32 to vector<8x128xf32>
    %667 = arith.subf %666, %663 : vector<8x128xf32>
    %668 = arith.select %665, %667, %663 : vector<8x128xi1>, vector<8x128xf32>
    %669 = arith.mulf %668, %668 : vector<8x128xf32>
    %670 = arith.mulf %669, %630 : vector<8x128xf32>
    %671 = vector.broadcast %587 : f32 to vector<8x128xf32>
    %672 = arith.mulf %670, %671 : vector<8x128xf32>
    %673 = math.exp %672 : vector<8x128xf32>
    %674 = vector.broadcast %588 : f32 to vector<8x128xf32>
    %675 = arith.mulf %673, %674 : vector<8x128xf32>
    %c5_284 = arith.constant 5 : index
    %676 = arith.index_cast %c0_i32 : i32 to index
    %c0_285 = arith.constant 0 : index
    %c0_286 = arith.constant 0 : index
    %677 = vector.load %arg4[%c5_284, %676, %c0_285, %c0_286] : memref<8x1x8x128xf32, #tpu.memory_space<vmem>>, vector<1x1x8x128xf32>
    %678 = vector.shape_cast %677 : vector<1x1x8x128xf32> to vector<8x128xf32>
    %679 = arith.mulf %678, %675 : vector<8x128xf32>
    %680 = arith.addf %575, %679 : vector<8x128xf32>
    %c6_287 = arith.constant 6 : index
    %c0_288 = arith.constant 0 : index
    %681 = memref.load %arg1[%c6_287, %c0_288] : memref<8x13xf32, #tpu.memory_space<smem>>
    %c6_289 = arith.constant 6 : index
    %c1_290 = arith.constant 1 : index
    %682 = memref.load %arg1[%c6_289, %c1_290] : memref<8x13xf32, #tpu.memory_space<smem>>
    %c6_291 = arith.constant 6 : index
    %c2_292 = arith.constant 2 : index
    %683 = memref.load %arg1[%c6_291, %c2_292] : memref<8x13xf32, #tpu.memory_space<smem>>
    %c6_293 = arith.constant 6 : index
    %c3_294 = arith.constant 3 : index
    %684 = memref.load %arg1[%c6_293, %c3_294] : memref<8x13xf32, #tpu.memory_space<smem>>
    %c6_295 = arith.constant 6 : index
    %c4_296 = arith.constant 4 : index
    %685 = memref.load %arg1[%c6_295, %c4_296] : memref<8x13xf32, #tpu.memory_space<smem>>
    %c6_297 = arith.constant 6 : index
    %c5_298 = arith.constant 5 : index
    %686 = memref.load %arg1[%c6_297, %c5_298] : memref<8x13xf32, #tpu.memory_space<smem>>
    %c6_299 = arith.constant 6 : index
    %c6_300 = arith.constant 6 : index
    %687 = memref.load %arg1[%c6_299, %c6_300] : memref<8x13xf32, #tpu.memory_space<smem>>
    %c6_301 = arith.constant 6 : index
    %c7_302 = arith.constant 7 : index
    %688 = memref.load %arg1[%c6_301, %c7_302] : memref<8x13xf32, #tpu.memory_space<smem>>
    %c6_303 = arith.constant 6 : index
    %c8_304 = arith.constant 8 : index
    %689 = memref.load %arg1[%c6_303, %c8_304] : memref<8x13xf32, #tpu.memory_space<smem>>
    %c6_305 = arith.constant 6 : index
    %c9_306 = arith.constant 9 : index
    %690 = memref.load %arg1[%c6_305, %c9_306] : memref<8x13xf32, #tpu.memory_space<smem>>
    %c6_307 = arith.constant 6 : index
    %c10_308 = arith.constant 10 : index
    %691 = memref.load %arg1[%c6_307, %c10_308] : memref<8x13xf32, #tpu.memory_space<smem>>
    %c6_309 = arith.constant 6 : index
    %c11_310 = arith.constant 11 : index
    %692 = memref.load %arg1[%c6_309, %c11_310] : memref<8x13xf32, #tpu.memory_space<smem>>
    %c6_311 = arith.constant 6 : index
    %c12_312 = arith.constant 12 : index
    %693 = memref.load %arg1[%c6_311, %c12_312] : memref<8x13xf32, #tpu.memory_space<smem>>
    %694 = vector.broadcast %687 : f32 to vector<8x128xf32>
    %695 = arith.mulf %29, %694 : vector<8x128xf32>
    %696 = vector.broadcast %688 : f32 to vector<8x128xf32>
    %697 = arith.mulf %30, %696 : vector<8x128xf32>
    %698 = arith.addf %695, %697 : vector<8x128xf32>
    %699 = vector.broadcast %689 : f32 to vector<8x128xf32>
    %700 = arith.mulf %31, %699 : vector<8x128xf32>
    %701 = arith.addf %698, %700 : vector<8x128xf32>
    %702 = vector.broadcast %681 : f32 to vector<8x128xf32>
    %703 = arith.mulf %29, %702 : vector<8x128xf32>
    %704 = vector.broadcast %682 : f32 to vector<8x128xf32>
    %705 = arith.mulf %30, %704 : vector<8x128xf32>
    %706 = arith.addf %703, %705 : vector<8x128xf32>
    %707 = vector.broadcast %683 : f32 to vector<8x128xf32>
    %708 = arith.mulf %31, %707 : vector<8x128xf32>
    %709 = arith.addf %706, %708 : vector<8x128xf32>
    %710 = vector.broadcast %684 : f32 to vector<8x128xf32>
    %711 = arith.mulf %29, %710 : vector<8x128xf32>
    %712 = vector.broadcast %685 : f32 to vector<8x128xf32>
    %713 = arith.mulf %30, %712 : vector<8x128xf32>
    %714 = arith.addf %711, %713 : vector<8x128xf32>
    %715 = vector.broadcast %686 : f32 to vector<8x128xf32>
    %716 = arith.mulf %31, %715 : vector<8x128xf32>
    %717 = arith.addf %714, %716 : vector<8x128xf32>
    %718 = arith.mulf %701, %701 : vector<8x128xf32>
    %cst_313 = arith.constant 1.000000e+00 : f32
    %719 = vector.broadcast %cst_313 : f32 to vector<8x128xf32>
    %720 = arith.subf %719, %718 : vector<8x128xf32>
    %cst_314 = arith.constant 1.000000e-24 : f32
    %721 = vector.broadcast %cst_314 : f32 to vector<8x128xf32>
    %722 = arith.maximumf %720, %721 : vector<8x128xf32>
    %723 = tpu.reciprocal %722 {approx = true} : vector<8x128xf32> -> vector<8x128xf32>
    %724 = arith.mulf %722, %723 : vector<8x128xf32>
    %cst_315 = arith.constant 2.000000e+00 : f32
    %725 = vector.broadcast %cst_315 : f32 to vector<8x128xf32>
    %726 = arith.subf %725, %724 : vector<8x128xf32>
    %727 = arith.mulf %723, %726 : vector<8x128xf32>
    %728 = arith.mulf %709, %709 : vector<8x128xf32>
    %729 = vector.broadcast %690 : f32 to vector<8x128xf32>
    %730 = arith.mulf %728, %729 : vector<8x128xf32>
    %731 = arith.mulf %717, %717 : vector<8x128xf32>
    %732 = vector.broadcast %691 : f32 to vector<8x128xf32>
    %733 = arith.mulf %731, %732 : vector<8x128xf32>
    %734 = arith.addf %730, %733 : vector<8x128xf32>
    %735 = arith.mulf %734, %727 : vector<8x128xf32>
    %cst_316 = arith.constant -0.999998986 : f32
    %cst_317 = arith.constant 0.999998986 : f32
    %736 = vector.broadcast %cst_316 : f32 to vector<8x128xf32>
    %737 = arith.maximumf %736, %701 : vector<8x128xf32>
    %738 = vector.broadcast %cst_317 : f32 to vector<8x128xf32>
    %739 = arith.minimumf %738, %737 : vector<8x128xf32>
    %740 = math.absf %739 : vector<8x128xf32>
    %cst_318 = arith.constant -0.0012624911 : f32
    %741 = vector.broadcast %cst_318 : f32 to vector<8x128xf32>
    %742 = arith.mulf %741, %740 : vector<8x128xf32>
    %cst_319 = arith.constant 6.670090e-03 : f32
    %743 = vector.broadcast %cst_319 : f32 to vector<8x128xf32>
    %744 = arith.addf %742, %743 : vector<8x128xf32>
    %745 = arith.mulf %744, %740 : vector<8x128xf32>
    %cst_320 = arith.constant -0.0170881264 : f32
    %746 = vector.broadcast %cst_320 : f32 to vector<8x128xf32>
    %747 = arith.addf %745, %746 : vector<8x128xf32>
    %748 = arith.mulf %747, %740 : vector<8x128xf32>
    %cst_321 = arith.constant 0.0308918804 : f32
    %749 = vector.broadcast %cst_321 : f32 to vector<8x128xf32>
    %750 = arith.addf %748, %749 : vector<8x128xf32>
    %751 = arith.mulf %750, %740 : vector<8x128xf32>
    %cst_322 = arith.constant -0.0501743034 : f32
    %752 = vector.broadcast %cst_322 : f32 to vector<8x128xf32>
    %753 = arith.addf %751, %752 : vector<8x128xf32>
    %754 = arith.mulf %753, %740 : vector<8x128xf32>
    %cst_323 = arith.constant 0.0889789909 : f32
    %755 = vector.broadcast %cst_323 : f32 to vector<8x128xf32>
    %756 = arith.addf %754, %755 : vector<8x128xf32>
    %757 = arith.mulf %756, %740 : vector<8x128xf32>
    %cst_324 = arith.constant -0.214598805 : f32
    %758 = vector.broadcast %cst_324 : f32 to vector<8x128xf32>
    %759 = arith.addf %757, %758 : vector<8x128xf32>
    %760 = arith.mulf %759, %740 : vector<8x128xf32>
    %cst_325 = arith.constant 1.57079625 : f32
    %761 = vector.broadcast %cst_325 : f32 to vector<8x128xf32>
    %762 = arith.addf %760, %761 : vector<8x128xf32>
    %cst_326 = arith.constant 1.000000e+00 : f32
    %763 = vector.broadcast %cst_326 : f32 to vector<8x128xf32>
    %764 = arith.subf %763, %740 : vector<8x128xf32>
    %cst_327 = arith.constant 0.000000e+00 : f32
    %765 = vector.broadcast %cst_327 : f32 to vector<8x128xf32>
    %766 = arith.maximumf %764, %765 : vector<8x128xf32>
    %767 = math.sqrt %766 : vector<8x128xf32>
    %768 = arith.mulf %762, %767 : vector<8x128xf32>
    %cst_328 = arith.constant 0.000000e+00 : f32
    %769 = vector.broadcast %cst_328 : f32 to vector<8x128xf32>
    %770 = arith.cmpf olt, %739, %769 : vector<8x128xf32>
    %cst_329 = arith.constant 3.14159274 : f32
    %771 = vector.broadcast %cst_329 : f32 to vector<8x128xf32>
    %772 = arith.subf %771, %768 : vector<8x128xf32>
    %773 = arith.select %770, %772, %768 : vector<8x128xi1>, vector<8x128xf32>
    %774 = arith.mulf %773, %773 : vector<8x128xf32>
    %775 = arith.mulf %774, %735 : vector<8x128xf32>
    %776 = vector.broadcast %692 : f32 to vector<8x128xf32>
    %777 = arith.mulf %775, %776 : vector<8x128xf32>
    %778 = math.exp %777 : vector<8x128xf32>
    %779 = vector.broadcast %693 : f32 to vector<8x128xf32>
    %780 = arith.mulf %778, %779 : vector<8x128xf32>
    %c6_330 = arith.constant 6 : index
    %781 = arith.index_cast %c0_i32 : i32 to index
    %c0_331 = arith.constant 0 : index
    %c0_332 = arith.constant 0 : index
    %782 = vector.load %arg4[%c6_330, %781, %c0_331, %c0_332] : memref<8x1x8x128xf32, #tpu.memory_space<vmem>>, vector<1x1x8x128xf32>
    %783 = vector.shape_cast %782 : vector<1x1x8x128xf32> to vector<8x128xf32>
    %784 = arith.mulf %783, %780 : vector<8x128xf32>
    %785 = arith.addf %680, %784 : vector<8x128xf32>
    %c7_333 = arith.constant 7 : index
    %c0_334 = arith.constant 0 : index
    %786 = memref.load %arg1[%c7_333, %c0_334] : memref<8x13xf32, #tpu.memory_space<smem>>
    %c7_335 = arith.constant 7 : index
    %c1_336 = arith.constant 1 : index
    %787 = memref.load %arg1[%c7_335, %c1_336] : memref<8x13xf32, #tpu.memory_space<smem>>
    %c7_337 = arith.constant 7 : index
    %c2_338 = arith.constant 2 : index
    %788 = memref.load %arg1[%c7_337, %c2_338] : memref<8x13xf32, #tpu.memory_space<smem>>
    %c7_339 = arith.constant 7 : index
    %c3_340 = arith.constant 3 : index
    %789 = memref.load %arg1[%c7_339, %c3_340] : memref<8x13xf32, #tpu.memory_space<smem>>
    %c7_341 = arith.constant 7 : index
    %c4_342 = arith.constant 4 : index
    %790 = memref.load %arg1[%c7_341, %c4_342] : memref<8x13xf32, #tpu.memory_space<smem>>
    %c7_343 = arith.constant 7 : index
    %c5_344 = arith.constant 5 : index
    %791 = memref.load %arg1[%c7_343, %c5_344] : memref<8x13xf32, #tpu.memory_space<smem>>
    %c7_345 = arith.constant 7 : index
    %c6_346 = arith.constant 6 : index
    %792 = memref.load %arg1[%c7_345, %c6_346] : memref<8x13xf32, #tpu.memory_space<smem>>
    %c7_347 = arith.constant 7 : index
    %c7_348 = arith.constant 7 : index
    %793 = memref.load %arg1[%c7_347, %c7_348] : memref<8x13xf32, #tpu.memory_space<smem>>
    %c7_349 = arith.constant 7 : index
    %c8_350 = arith.constant 8 : index
    %794 = memref.load %arg1[%c7_349, %c8_350] : memref<8x13xf32, #tpu.memory_space<smem>>
    %c7_351 = arith.constant 7 : index
    %c9_352 = arith.constant 9 : index
    %795 = memref.load %arg1[%c7_351, %c9_352] : memref<8x13xf32, #tpu.memory_space<smem>>
    %c7_353 = arith.constant 7 : index
    %c10_354 = arith.constant 10 : index
    %796 = memref.load %arg1[%c7_353, %c10_354] : memref<8x13xf32, #tpu.memory_space<smem>>
    %c7_355 = arith.constant 7 : index
    %c11_356 = arith.constant 11 : index
    %797 = memref.load %arg1[%c7_355, %c11_356] : memref<8x13xf32, #tpu.memory_space<smem>>
    %c7_357 = arith.constant 7 : index
    %c12_358 = arith.constant 12 : index
    %798 = memref.load %arg1[%c7_357, %c12_358] : memref<8x13xf32, #tpu.memory_space<smem>>
    %799 = vector.broadcast %792 : f32 to vector<8x128xf32>
    %800 = arith.mulf %29, %799 : vector<8x128xf32>
    %801 = vector.broadcast %793 : f32 to vector<8x128xf32>
    %802 = arith.mulf %30, %801 : vector<8x128xf32>
    %803 = arith.addf %800, %802 : vector<8x128xf32>
    %804 = vector.broadcast %794 : f32 to vector<8x128xf32>
    %805 = arith.mulf %31, %804 : vector<8x128xf32>
    %806 = arith.addf %803, %805 : vector<8x128xf32>
    %807 = vector.broadcast %786 : f32 to vector<8x128xf32>
    %808 = arith.mulf %29, %807 : vector<8x128xf32>
    %809 = vector.broadcast %787 : f32 to vector<8x128xf32>
    %810 = arith.mulf %30, %809 : vector<8x128xf32>
    %811 = arith.addf %808, %810 : vector<8x128xf32>
    %812 = vector.broadcast %788 : f32 to vector<8x128xf32>
    %813 = arith.mulf %31, %812 : vector<8x128xf32>
    %814 = arith.addf %811, %813 : vector<8x128xf32>
    %815 = vector.broadcast %789 : f32 to vector<8x128xf32>
    %816 = arith.mulf %29, %815 : vector<8x128xf32>
    %817 = vector.broadcast %790 : f32 to vector<8x128xf32>
    %818 = arith.mulf %30, %817 : vector<8x128xf32>
    %819 = arith.addf %816, %818 : vector<8x128xf32>
    %820 = vector.broadcast %791 : f32 to vector<8x128xf32>
    %821 = arith.mulf %31, %820 : vector<8x128xf32>
    %822 = arith.addf %819, %821 : vector<8x128xf32>
    %823 = arith.mulf %806, %806 : vector<8x128xf32>
    %cst_359 = arith.constant 1.000000e+00 : f32
    %824 = vector.broadcast %cst_359 : f32 to vector<8x128xf32>
    %825 = arith.subf %824, %823 : vector<8x128xf32>
    %cst_360 = arith.constant 1.000000e-24 : f32
    %826 = vector.broadcast %cst_360 : f32 to vector<8x128xf32>
    %827 = arith.maximumf %825, %826 : vector<8x128xf32>
    %828 = tpu.reciprocal %827 {approx = true} : vector<8x128xf32> -> vector<8x128xf32>
    %829 = arith.mulf %827, %828 : vector<8x128xf32>
    %cst_361 = arith.constant 2.000000e+00 : f32
    %830 = vector.broadcast %cst_361 : f32 to vector<8x128xf32>
    %831 = arith.subf %830, %829 : vector<8x128xf32>
    %832 = arith.mulf %828, %831 : vector<8x128xf32>
    %833 = arith.mulf %814, %814 : vector<8x128xf32>
    %834 = vector.broadcast %795 : f32 to vector<8x128xf32>
    %835 = arith.mulf %833, %834 : vector<8x128xf32>
    %836 = arith.mulf %822, %822 : vector<8x128xf32>
    %837 = vector.broadcast %796 : f32 to vector<8x128xf32>
    %838 = arith.mulf %836, %837 : vector<8x128xf32>
    %839 = arith.addf %835, %838 : vector<8x128xf32>
    %840 = arith.mulf %839, %832 : vector<8x128xf32>
    %cst_362 = arith.constant -0.999998986 : f32
    %cst_363 = arith.constant 0.999998986 : f32
    %841 = vector.broadcast %cst_362 : f32 to vector<8x128xf32>
    %842 = arith.maximumf %841, %806 : vector<8x128xf32>
    %843 = vector.broadcast %cst_363 : f32 to vector<8x128xf32>
    %844 = arith.minimumf %843, %842 : vector<8x128xf32>
    %845 = math.absf %844 : vector<8x128xf32>
    %cst_364 = arith.constant -0.0012624911 : f32
    %846 = vector.broadcast %cst_364 : f32 to vector<8x128xf32>
    %847 = arith.mulf %846, %845 : vector<8x128xf32>
    %cst_365 = arith.constant 6.670090e-03 : f32
    %848 = vector.broadcast %cst_365 : f32 to vector<8x128xf32>
    %849 = arith.addf %847, %848 : vector<8x128xf32>
    %850 = arith.mulf %849, %845 : vector<8x128xf32>
    %cst_366 = arith.constant -0.0170881264 : f32
    %851 = vector.broadcast %cst_366 : f32 to vector<8x128xf32>
    %852 = arith.addf %850, %851 : vector<8x128xf32>
    %853 = arith.mulf %852, %845 : vector<8x128xf32>
    %cst_367 = arith.constant 0.0308918804 : f32
    %854 = vector.broadcast %cst_367 : f32 to vector<8x128xf32>
    %855 = arith.addf %853, %854 : vector<8x128xf32>
    %856 = arith.mulf %855, %845 : vector<8x128xf32>
    %cst_368 = arith.constant -0.0501743034 : f32
    %857 = vector.broadcast %cst_368 : f32 to vector<8x128xf32>
    %858 = arith.addf %856, %857 : vector<8x128xf32>
    %859 = arith.mulf %858, %845 : vector<8x128xf32>
    %cst_369 = arith.constant 0.0889789909 : f32
    %860 = vector.broadcast %cst_369 : f32 to vector<8x128xf32>
    %861 = arith.addf %859, %860 : vector<8x128xf32>
    %862 = arith.mulf %861, %845 : vector<8x128xf32>
    %cst_370 = arith.constant -0.214598805 : f32
    %863 = vector.broadcast %cst_370 : f32 to vector<8x128xf32>
    %864 = arith.addf %862, %863 : vector<8x128xf32>
    %865 = arith.mulf %864, %845 : vector<8x128xf32>
    %cst_371 = arith.constant 1.57079625 : f32
    %866 = vector.broadcast %cst_371 : f32 to vector<8x128xf32>
    %867 = arith.addf %865, %866 : vector<8x128xf32>
    %cst_372 = arith.constant 1.000000e+00 : f32
    %868 = vector.broadcast %cst_372 : f32 to vector<8x128xf32>
    %869 = arith.subf %868, %845 : vector<8x128xf32>
    %cst_373 = arith.constant 0.000000e+00 : f32
    %870 = vector.broadcast %cst_373 : f32 to vector<8x128xf32>
    %871 = arith.maximumf %869, %870 : vector<8x128xf32>
    %872 = math.sqrt %871 : vector<8x128xf32>
    %873 = arith.mulf %867, %872 : vector<8x128xf32>
    %cst_374 = arith.constant 0.000000e+00 : f32
    %874 = vector.broadcast %cst_374 : f32 to vector<8x128xf32>
    %875 = arith.cmpf olt, %844, %874 : vector<8x128xf32>
    %cst_375 = arith.constant 3.14159274 : f32
    %876 = vector.broadcast %cst_375 : f32 to vector<8x128xf32>
    %877 = arith.subf %876, %873 : vector<8x128xf32>
    %878 = arith.select %875, %877, %873 : vector<8x128xi1>, vector<8x128xf32>
    %879 = arith.mulf %878, %878 : vector<8x128xf32>
    %880 = arith.mulf %879, %840 : vector<8x128xf32>
    %881 = vector.broadcast %797 : f32 to vector<8x128xf32>
    %882 = arith.mulf %880, %881 : vector<8x128xf32>
    %883 = math.exp %882 : vector<8x128xf32>
    %884 = vector.broadcast %798 : f32 to vector<8x128xf32>
    %885 = arith.mulf %883, %884 : vector<8x128xf32>
    %c7_376 = arith.constant 7 : index
    %886 = arith.index_cast %c0_i32 : i32 to index
    %c0_377 = arith.constant 0 : index
    %c0_378 = arith.constant 0 : index
    %887 = vector.load %arg4[%c7_376, %886, %c0_377, %c0_378] : memref<8x1x8x128xf32, #tpu.memory_space<vmem>>, vector<1x1x8x128xf32>
    %888 = vector.shape_cast %887 : vector<1x1x8x128xf32> to vector<8x128xf32>
    %889 = arith.mulf %888, %885 : vector<8x128xf32>
    %890 = arith.addf %785, %889 : vector<8x128xf32>
    %891 = arith.mulf %890, %49 : vector<8x128xf32>
    %892 = arith.index_cast %c0_i32 : i32 to index
    %c0_379 = arith.constant 0 : index
    %c0_380 = arith.constant 0 : index
    %893 = vector.load %arg5[%892, %c0_379, %c0_380] : memref<1x8x128xf32, #tpu.memory_space<vmem>>, vector<1x8x128xf32>
    %894 = vector.shape_cast %893 : vector<1x8x128xf32> to vector<8x128xf32>
    %895 = vector.shape_cast %891 : vector<8x128xf32> to vector<1x8x128xf32>
    tpu.vector_store %arg5[%892, %c0_379, %c0_380], %895 {strides = array<i32>} : memref<1x8x128xf32, #tpu.memory_space<vmem>>, vector<1x8x128xf32>,
    %c1_i32 = arith.constant 1 : i32
    return
  }
  func.func @transform_0(%arg0: i32, %arg1: memref<8x13xf32, #tpu.memory_space<smem>>) -> (i32, i32, i32, i32) {
    %c0_i32 = arith.constant 0 : i32
    %c0_i32_0 = arith.constant 0 : i32
    %c0_i32_1 = arith.constant 0 : i32
    %c0_i32_2 = arith.constant 0 : i32
    return %c0_i32, %arg0, %c0_i32_0, %c0_i32_1 : i32, i32, i32, i32
  }
  func.func @transform_1(%arg0: i32, %arg1: memref<8x13xf32, #tpu.memory_space<smem>>) -> (i32, i32, i32, i32) {
    %c0_i32 = arith.constant 0 : i32
    %c0_i32_0 = arith.constant 0 : i32
    %c0_i32_1 = arith.constant 0 : i32
    %c0_i32_2 = arith.constant 0 : i32
    return %c0_i32, %arg0, %c0_i32_0, %c0_i32_1 : i32, i32, i32, i32
  }
  func.func @transform_2(%arg0: i32, %arg1: memref<8x13xf32, #tpu.memory_space<smem>>) -> (i32, i32, i32, i32) {
    %c0_i32 = arith.constant 0 : i32
    %c0_i32_0 = arith.constant 0 : i32
    %c0_i32_1 = arith.constant 0 : i32
    %c0_i32_2 = arith.constant 0 : i32
    return %c0_i32, %arg0, %c0_i32_0, %c0_i32_1 : i32, i32, i32, i32
  }
  func.func @transform_3(%arg0: i32, %arg1: memref<8x13xf32, #tpu.memory_space<smem>>) -> (i32, i32, i32) {
    %c0_i32 = arith.constant 0 : i32
    %c0_i32_0 = arith.constant 0 : i32
    %c0_i32_1 = arith.constant 0 : i32
    return %arg0, %c0_i32, %c0_i32_0 : i32, i32, i32
  }
}

</mosaic_0001>

<llo_original>
// kernel: mixture_of_asg_forward.1
$region0: #{mixture_of_asg_forward.1}
  #allocation0 [shape = 'u32[]', space=smem, size = 0x4, offset = 0x4, fixed_abs, tag = 'smem constant byte address 0x4 - core index']
  #allocation1 [shape = 'u32[144,128]{1,0:T(1,128)}', space=vmem, size = 0x12000, scoped, tag = 'internal scratch']
  #allocation2 [shape = 's32[1]{0}', space=sflag, size = 0x4, scoped, tag = 'scoped memory for mixture_of_asg_forward.1']
  #allocation3 [shape = 'u8[4096]{0}', space=smem, size = 0x1000, scoped, tag = 'prefetched SMEM operand 0']
  %s0 = inlined_call_operand.vmem [shape: f32[8,13], index: 0, kind: input, shape index: {}]
  %s1 = inlined_call_operand.vmem [shape: f32[3,1,8,128], index: 1, kind: input, shape index: {}]
  %s2 = inlined_call_operand.vmem [shape: f32[3,1,8,128], index: 2, kind: input, shape index: {}]
  %s3 = inlined_call_operand.vmem [shape: f32[8,1,8,128], index: 3, kind: input, shape index: {}]
  %s4 = inlined_call_operand.vmem [shape: f32[1,8,128], index: 4, kind: output, shape index: {}]
  %s5 = sld [smem:[#allocation0]]
  $region22: #{mixture_of_asg_forward.1} parent=0
    _
  %s7 = ssub.s32 1, %s5
  %s8 = scalar_select 0, %s7, %s5
  %s9 = sshll.u32 %s0, 4
  %s10 = int_to_ptr.vmem [resolvable:$true] %s9
  %12 = dma.vmem_to_smem %s10, 128, [#allocation3], [#allocation2]
  %13 = dma.done [#allocation2], 128
  %14 = sfence
  // Predicated region
  $region2: #{mixture_of_asg_forward.1} parent=0 // pred_check
    _
  $region3: #{mixture_of_asg_forward.1} parent=0 // pred_check_branch
    %16 = sbr.rel (0) target = $region5
  $region4: #{mixture_of_asg_forward.1} parent=0 // pred_region
    _
  $region5: #{mixture_of_asg_forward.1} parent=0 // pred_fallthru
    _
  // Predicated region
  $region6: #{mixture_of_asg_forward.1} parent=0 // pred_check
    _
  $region7: #{mixture_of_asg_forward.1} parent=0 // pred_check_branch
    %18 = sbr.rel (0) target = $region9
  $region8: #{mixture_of_asg_forward.1} parent=0 // pred_region
    _
  $region9: #{mixture_of_asg_forward.1} parent=0 // pred_fallthru
    _
  // Predicated region
  $region10: #{mixture_of_asg_forward.1} parent=0 // pred_check
    _
  $region11: #{mixture_of_asg_forward.1} parent=0 // pred_check_branch
    %20 = sbr.rel (0) target = $region13
  $region12: #{mixture_of_asg_forward.1} parent=0 // pred_region
    _
  $region13: #{mixture_of_asg_forward.1} parent=0 // pred_fallthru
    _
  %v21 = vld [vmem:[%s1] sm:$0xff]
  %s22 = scalar_lea.vmem %s1, 8
  %v23 = vld [vmem:[%s22] sm:$0xff]
  %s24 = scalar_lea.vmem %s1, 16
  %v25 = vld [vmem:[%s24] sm:$0xff]
  %v26 = vld [vmem:[%s2] sm:$0xff]
  %s27 = scalar_lea.vmem %s2, 8
  %v28 = vld [vmem:[%s27] sm:$0xff]
  %s29 = scalar_lea.vmem %s2, 16
  %v30 = vld [vmem:[%s29] sm:$0xff]
  %v31 = vadd.f32 %v21, %v26
  %v32 = vadd.f32 %v23, %v28
  %v33 = vadd.f32 %v25, %v30
  %v34 = vmul.f32 %v31, %v31
  %v35 = vmul.f32 %v32, %v32
  %v36 = vadd.f32 %v34, %v35
  %v37 = vmul.f32 %v33, %v33
  %v38 = vadd.f32 %v36, %v37
  %v39 = vmax.f32 %v38, 1e-24
  %v40 = vrsqrt.pop %v39
  %v41 = vmul.f32 %v31, %v40
  %v42 = vmul.f32 %v32, %v40
  %v43 = vmul.f32 %v33, %v40
  %v44 = vmul.f32 %v21, %v41
  %v45 = vmul.f32 %v23, %v42
  %v46 = vadd.f32 %v44, %v45
  %v47 = vmul.f32 %v25, %v43
  %v48 = vadd.f32 %v46, %v47
  %v49 = vsub.f32 1.0, %v48
  %v50 = vmax.f32 %v49, 0.0
  %v51 = vmin.f32 %v50, 1.0
  %v52 = vmul.f32 %v51, %v51
  %v53 = vmul.f32 %v52, %v52
  %v54 = vmul.f32 %v53, %v51
  %v55 = vmul.f32 %v54, 0.96
  %v56 = vadd.f32 %v55, 0.04
  %s57 = sld [smem:[#allocation3]]
  %s58 = sld [smem:[#allocation3 + $0x1]]
  %s59 = sld [smem:[#allocation3 + $0x2]]
  %s60 = sld [smem:[#allocation3 + $0x3]]
  %s61 = sld [smem:[#allocation3 + $0x4]]
  %s62 = sld [smem:[#allocation3 + $0x5]]
  %s63 = sld [smem:[#allocation3 + $0x6]]
  %s64 = sld [smem:[#allocation3 + $0x7]]
  %s65 = sld [smem:[#allocation3 + $0x8]]
  %s66 = sld [smem:[#allocation3 + $0x9]]
  %s67 = sld [smem:[#allocation3 + $0xa]]
  %s68 = sld [smem:[#allocation3 + $0xb]]
  %s69 = sld [smem:[#allocation3 + $0xc]]
  %v70 = vstv %s63
  %v71 = vmul.f32 %v41, %v70
  %v72 = vstv %s64
  %v73 = vmul.f32 %v42, %v72
  %v74 = vadd.f32 %v71, %v73
  %v75 = vstv %s65
  %v76 = vmul.f32 %v43, %v75
  %v77 = vadd.f32 %v74, %v76
  %v78 = vstv %s57
  %v79 = vmul.f32 %v41, %v78
  %v80 = vstv %s58
  %v81 = vmul.f32 %v42, %v80
  %v82 = vadd.f32 %v79, %v81
  %v83 = vstv %s59
  %v84 = vmul.f32 %v43, %v83
  %v85 = vadd.f32 %v82, %v84
  %v86 = vstv %s60
  %v87 = vmul.f32 %v41, %v86
  %v88 = vstv %s61
  %v89 = vmul.f32 %v42, %v88
  %v90 = vadd.f32 %v87, %v89
  %v91 = vstv %s62
  %v92 = vmul.f32 %v43, %v91
  %v93 = vadd.f32 %v90, %v92
  %v94 = vmul.f32 %v77, %v77
  %v95 = vsub.f32 1.0, %v94
  %v96 = vmax.f32 %v95, 1e-24
  %v97 = vrcp.pop %v96
  %v98 = vmul.f32 %v96, %v97
  %v99 = vsub.f32 2.0, %v98
  %v100 = vmul.f32 %v97, %v99
  %v101 = vmul.f32 %v85, %v85
  %v102 = vstv %s66
  %v103 = vmul.f32 %v101, %v102
  %v104 = vmul.f32 %v93, %v93
  %v105 = vstv %s67
  %v106 = vmul.f32 %v104, %v105
  %v107 = vadd.f32 %v103, %v106
  %v108 = vmul.f32 %v107, %v100
  %v109 = vmax.f32 %v77, -0.999999
  %v110 = vmin.f32 %v109, 0.999999
  %v111 = vand.u32 2147483647, %v110
  %v112 = vmul.f32 %v111, -0.0012624911
  %v113 = vadd.f32 %v112, 0.00667009
  %v114 = vmul.f32 %v113, %v111
  %v115 = vadd.f32 %v114, -0.017088126
  %v116 = vmul.f32 %v115, %v111
  %v117 = vadd.f32 %v116, 0.03089188
  %v118 = vmul.f32 %v117, %v111
  %v119 = vadd.f32 %v118, -0.050174303
  %v120 = vmul.f32 %v119, %v111
  %v121 = vadd.f32 %v120, 0.08897899
  %v122 = vmul.f32 %v121, %v111
  %v123 = vadd.f32 %v122, -0.2145988
  %v124 = vmul.f32 %v123, %v111
  %v125 = vadd.f32 %v124, 1.5707963
  %v126 = vsub.f32 1.0, %v111
  %v127 = vmax.f32 %v126, 0.0
  %v128 = vrsqrt.pop %v127
  %v129 = vmul.f32 %v127, %v128
  %vm130 = vcmp.eq.f32.partialorder %v127, inf
  %v131 = vsel %vm130, %v127, %v129
  %vm132 = vcmp.eq.f32.partialorder %v127, 0.0
  %v133 = vand.u32 %v127, 2147483648
  %v134 = vsel %vm132, %v133, %v131
  %v135 = vmul.f32 %v125, %v134
  %vm136 = vcmp.lt.f32.partialorder %v110, 0.0
  %v137 = vsub.f32 3.1415927, %v135
  %v138 = vsel %vm136, %v137, %v135
  %v139 = vmul.f32 %v138, %v138
  %v140 = vmul.f32 %v139, %v108
  %v141 = vstv %s68
  %v142 = vmul.f32 %v140, %v141
  %v143 = vmul.f32 %v142, 1.442695
  %v144 = vpow.pop %v143
  %v145 = vstv %s69
  %v146 = vmul.f32 %v144, %v145
  %v147 = vld [vmem:[%s3] sm:$0xff]
  %v148 = vmul.f32 %v147, %v146
  %v149 = vadd.f32 %v148, 0.0
  %s150 = sld [smem:[#allocation3 + $0x80]]
  %s151 = sld [smem:[#allocation3 + $0x81]]
  %s152 = sld [smem:[#allocation3 + $0x82]]
  %s153 = sld [smem:[#allocation3 + $0x83]]
  %s154 = sld [smem:[#allocation3 + $0x84]]
  %s155 = sld [smem:[#allocation3 + $0x85]]
  %s156 = sld [smem:[#allocation3 + $0x86]]
  %s157 = sld [smem:[#allocation3 + $0x87]]
  %s158 = sld [smem:[#allocation3 + $0x88]]
  %s159 = sld [smem:[#allocation3 + $0x89]]
  %s160 = sld [smem:[#allocation3 + $0x8a]]
  %s161 = sld [smem:[#allocation3 + $0x8b]]
  %s162 = sld [smem:[#allocation3 + $0x8c]]
  %v163 = vstv %s156
  %v164 = vmul.f32 %v41, %v163
  %v165 = vstv %s157
  %v166 = vmul.f32 %v42, %v165
  %v167 = vadd.f32 %v164, %v166
  %v168 = vstv %s158
  %v169 = vmul.f32 %v43, %v168
  %v170 = vadd.f32 %v167, %v169
  %v171 = vstv %s150
  %v172 = vmul.f32 %v41, %v171
  %v173 = vstv %s151
  %v174 = vmul.f32 %v42, %v173
  %v175 = vadd.f32 %v172, %v174
  %v176 = vstv %s152
  %v177 = vmul.f32 %v43, %v176
  %v178 = vadd.f32 %v175, %v177
  %v179 = vstv %s153
  %v180 = vmul.f32 %v41, %v179
  %v181 = vstv %s154
  %v182 = vmul.f32 %v42, %v181
  %v183 = vadd.f32 %v180, %v182
  %v184 = vstv %s155
  %v185 = vmul.f32 %v43, %v184
  %v186 = vadd.f32 %v183, %v185
  %v187 = vmul.f32 %v170, %v170
  %v188 = vsub.f32 1.0, %v187
  %v189 = vmax.f32 %v188, 1e-24
  %v190 = vrcp.pop %v189
  %v191 = vmul.f32 %v189, %v190
  %v192 = vsub.f32 2.0, %v191
  %v193 = vmul.f32 %v190, %v192
  %v194 = vmul.f32 %v178, %v178
  %v195 = vstv %s159
  %v196 = vmul.f32 %v194, %v195
  %v197 = vmul.f32 %v186, %v186
  %v198 = vstv %s160
  %v199 = vmul.f32 %v197, %v198
  %v200 = vadd.f32 %v196, %v199
  %v201 = vmul.f32 %v200, %v193
  %v202 = vmax.f32 %v170, -0.999999
  %v203 = vmin.f32 %v202, 0.999999
  %v204 = vand.u32 2147483647, %v203
  %v205 = vmul.f32 %v204, -0.0012624911
  %v206 = vadd.f32 %v205, 0.00667009
  %v207 = vmul.f32 %v206, %v204
  %v208 = vadd.f32 %v207, -0.017088126
  %v209 = vmul.f32 %v208, %v204
  %v210 = vadd.f32 %v209, 0.03089188
  %v211 = vmul.f32 %v210, %v204
  %v212 = vadd.f32 %v211, -0.050174303
  %v213 = vmul.f32 %v212, %v204
  %v214 = vadd.f32 %v213, 0.08897899
  %v215 = vmul.f32 %v214, %v204
  %v216 = vadd.f32 %v215, -0.2145988
  %v217 = vmul.f32 %v216, %v204
  %v218 = vadd.f32 %v217, 1.5707963
  %v219 = vsub.f32 1.0, %v204
  %v220 = vmax.f32 %v219, 0.0
  %v221 = vrsqrt.pop %v220
  %v222 = vmul.f32 %v220, %v221
  %vm223 = vcmp.eq.f32.partialorder %v220, inf
  %v224 = vsel %vm223, %v220, %v222
  %vm225 = vcmp.eq.f32.partialorder %v220, 0.0
  %v226 = vand.u32 %v220, 2147483648
  %v227 = vsel %vm225, %v226, %v224
  %v228 = vmul.f32 %v218, %v227
  %vm229 = vcmp.lt.f32.partialorder %v203, 0.0
  %v230 = vsub.f32 3.1415927, %v228
  %v231 = vsel %vm229, %v230, %v228
  %v232 = vmul.f32 %v231, %v231
  %v233 = vmul.f32 %v232, %v201
  %v234 = vstv %s161
  %v235 = vmul.f32 %v233, %v234
  %v236 = vmul.f32 %v235, 1.442695
  %v237 = vpow.pop %v236
  %v238 = vstv %s162
  %v239 = vmul.f32 %v237, %v238
  %s240 = scalar_lea.vmem %s3, 8
  %v241 = vld [vmem:[%s240] sm:$0xff]
  %v242 = vmul.f32 %v241, %v239
  %v243 = vadd.f32 %v149, %v242
  %s244 = sld [smem:[#allocation3 + $0x100]]
  %s245 = sld [smem:[#allocation3 + $0x101]]
  %s246 = sld [smem:[#allocation3 + $0x102]]
  %s247 = sld [smem:[#allocation3 + $0x103]]
  %s248 = sld [smem:[#allocation3 + $0x104]]
  %s249 = sld [smem:[#allocation3 + $0x105]]
  %s250 = sld [smem:[#allocation3 + $0x106]]
  %s251 = sld [smem:[#allocation3 + $0x107]]
  %s252 = sld [smem:[#allocation3 + $0x108]]
  %s253 = sld [smem:[#allocation3 + $0x109]]
  %s254 = sld [smem:[#allocation3 + $0x10a]]
  %s255 = sld [smem:[#allocation3 + $0x10b]]
  %s256 = sld [smem:[#allocation3 + $0x10c]]
  %v257 = vstv %s250
  %v258 = vmul.f32 %v41, %v257
  %v259 = vstv %s251
  %v260 = vmul.f32 %v42, %v259
  %v261 = vadd.f32 %v258, %v260
  %v262 = vstv %s252
  %v263 = vmul.f32 %v43, %v262
  %v264 = vadd.f32 %v261, %v263
  %v265 = vstv %s244
  %v266 = vmul.f32 %v41, %v265
  %v267 = vstv %s245
  %v268 = vmul.f32 %v42, %v267
  %v269 = vadd.f32 %v266, %v268
  %v270 = vstv %s246
  %v271 = vmul.f32 %v43, %v270
  %v272 = vadd.f32 %v269, %v271
  %v273 = vstv %s247
  %v274 = vmul.f32 %v41, %v273
  %v275 = vstv %s248
  %v276 = vmul.f32 %v42, %v275
  %v277 = vadd.f32 %v274, %v276
  %v278 = vstv %s249
  %v279 = vmul.f32 %v43, %v278
  %v280 = vadd.f32 %v277, %v279
  %v281 = vmul.f32 %v264, %v264
  %v282 = vsub.f32 1.0, %v281
  %v283 = vmax.f32 %v282, 1e-24
  %v284 = vrcp.pop %v283
  %v285 = vmul.f32 %v283, %v284
  %v286 = vsub.f32 2.0, %v285
  %v287 = vmul.f32 %v284, %v286
  %v288 = vmul.f32 %v272, %v272
  %v289 = vstv %s253
  %v290 = vmul.f32 %v288, %v289
  %v291 = vmul.f32 %v280, %v280
  %v292 = vstv %s254
  %v293 = vmul.f32 %v291, %v292
  %v294 = vadd.f32 %v290, %v293
  %v295 = vmul.f32 %v294, %v287
  %v296 = vmax.f32 %v264, -0.999999
  %v297 = vmin.f32 %v296, 0.999999
  %v298 = vand.u32 2147483647, %v297
  %v299 = vmul.f32 %v298, -0.0012624911
  %v300 = vadd.f32 %v299, 0.00667009
  %v301 = vmul.f32 %v300, %v298
  %v302 = vadd.f32 %v301, -0.017088126
  %v303 = vmul.f32 %v302, %v298
  %v304 = vadd.f32 %v303, 0.03089188
  %v305 = vmul.f32 %v304, %v298
  %v306 = vadd.f32 %v305, -0.050174303
  %v307 = vmul.f32 %v306, %v298
  %v308 = vadd.f32 %v307, 0.08897899
  %v309 = vmul.f32 %v308, %v298
  %v310 = vadd.f32 %v309, -0.2145988
  %v311 = vmul.f32 %v310, %v298
  %v312 = vadd.f32 %v311, 1.5707963
  %v313 = vsub.f32 1.0, %v298
  %v314 = vmax.f32 %v313, 0.0
  %v315 = vrsqrt.pop %v314
  %v316 = vmul.f32 %v314, %v315
  %vm317 = vcmp.eq.f32.partialorder %v314, inf
  %v318 = vsel %vm317, %v314, %v316
  %vm319 = vcmp.eq.f32.partialorder %v314, 0.0
  %v320 = vand.u32 %v314, 2147483648
  %v321 = vsel %vm319, %v320, %v318
  %v322 = vmul.f32 %v312, %v321
  %vm323 = vcmp.lt.f32.partialorder %v297, 0.0
  %v324 = vsub.f32 3.1415927, %v322
  %v325 = vsel %vm323, %v324, %v322
  %v326 = vmul.f32 %v325, %v325
  %v327 = vmul.f32 %v326, %v295
  %v328 = vstv %s255
  %v329 = vmul.f32 %v327, %v328
  %v330 = vmul.f32 %v329, 1.442695
  %v331 = vpow.pop %v330
  %v332 = vstv %s256
  %v333 = vmul.f32 %v331, %v332
  %s334 = scalar_lea.vmem %s3, 16
  %v335 = vld [vmem:[%s334] sm:$0xff]
  %v336 = vmul.f32 %v335, %v333
  %v337 = vadd.f32 %v243, %v336
  %s338 = sld [smem:[#allocation3 + $0x180]]
  %s339 = sld [smem:[#allocation3 + $0x181]]
  %s340 = sld [smem:[#allocation3 + $0x182]]
  %s341 = sld [smem:[#allocation3 + $0x183]]
  %s342 = sld [smem:[#allocation3 + $0x184]]
  %s343 = sld [smem:[#allocation3 + $0x185]]
  %s344 = sld [smem:[#allocation3 + $0x186]]
  %s345 = sld [smem:[#allocation3 + $0x187]]
  %s346 = sld [smem:[#allocation3 + $0x188]]
  %s347 = sld [smem:[#allocation3 + $0x189]]
  %s348 = sld [smem:[#allocation3 + $0x18a]]
  %s349 = sld [smem:[#allocation3 + $0x18b]]
  %s350 = sld [smem:[#allocation3 + $0x18c]]
  %v351 = vstv %s344
  %v352 = vmul.f32 %v41, %v351
  %v353 = vstv %s345
  %v354 = vmul.f32 %v42, %v353
  %v355 = vadd.f32 %v352, %v354
  %v356 = vstv %s346
  %v357 = vmul.f32 %v43, %v356
  %v358 = vadd.f32 %v355, %v357
  %v359 = vstv %s338
  %v360 = vmul.f32 %v41, %v359
  %v361 = vstv %s339
  %v362 = vmul.f32 %v42, %v361
  %v363 = vadd.f32 %v360, %v362
  %v364 = vstv %s340
  %v365 = vmul.f32 %v43, %v364
  %v366 = vadd.f32 %v363, %v365
  %v367 = vstv %s341
  %v368 = vmul.f32 %v41, %v367
  %v369 = vstv %s342
  %v370 = vmul.f32 %v42, %v369
  %v371 = vadd.f32 %v368, %v370
  %v372 = vstv %s343
  %v373 = vmul.f32 %v43, %v372
  %v374 = vadd.f32 %v371, %v373
  %v375 = vmul.f32 %v358, %v358
  %v376 = vsub.f32 1.0, %v375
  %v377 = vmax.f32 %v376, 1e-24
  %v378 = vrcp.pop %v377
  %v379 = vmul.f32 %v377, %v378
  %v380 = vsub.f32 2.0, %v379
  %v381 = vmul.f32 %v378, %v380
  %v382 = vmul.f32 %v366, %v366
  %v383 = vstv %s347
  %v384 = vmul.f32 %v382, %v383
  %v385 = vmul.f32 %v374, %v374
  %v386 = vstv %s348
  %v387 = vmul.f32 %v385, %v386
  %v388 = vadd.f32 %v384, %v387
  %v389 = vmul.f32 %v388, %v381
  %v390 = vmax.f32 %v358, -0.999999
  %v391 = vmin.f32 %v390, 0.999999
  %v392 = vand.u32 2147483647, %v391
  %v393 = vmul.f32 %v392, -0.0012624911
  %v394 = vadd.f32 %v393, 0.00667009
  %v395 = vmul.f32 %v394, %v392
  %v396 = vadd.f32 %v395, -0.017088126
  %v397 = vmul.f32 %v396, %v392
  %v398 = vadd.f32 %v397, 0.03089188
  %v399 = vmul.f32 %v398, %v392
  %v400 = vadd.f32 %v399, -0.050174303
  %v401 = vmul.f32 %v400, %v392
  %v402 = vadd.f32 %v401, 0.08897899
  %v403 = vmul.f32 %v402, %v392
  %v404 = vadd.f32 %v403, -0.2145988
  %v405 = vmul.f32 %v404, %v392
  %v406 = vadd.f32 %v405, 1.5707963
  %v407 = vsub.f32 1.0, %v392
  %v408 = vmax.f32 %v407, 0.0
  %v409 = vrsqrt.pop %v408
  %v410 = vmul.f32 %v408, %v409
  %vm411 = vcmp.eq.f32.partialorder %v408, inf
  %v412 = vsel %vm411, %v408, %v410
  %vm413 = vcmp.eq.f32.partialorder %v408, 0.0
  %v414 = vand.u32 %v408, 2147483648
  %v415 = vsel %vm413, %v414, %v412
  %v416 = vmul.f32 %v406, %v415
  %vm417 = vcmp.lt.f32.partialorder %v391, 0.0
  %v418 = vsub.f32 3.1415927, %v416
  %v419 = vsel %vm417, %v418, %v416
  %v420 = vmul.f32 %v419, %v419
  %v421 = vmul.f32 %v420, %v389
  %v422 = vstv %s349
  %v423 = vmul.f32 %v421, %v422
  %v424 = vmul.f32 %v423, 1.442695
  %v425 = vpow.pop %v424
  %v426 = vstv %s350
  %v427 = vmul.f32 %v425, %v426
  %s428 = scalar_lea.vmem %s3, 24
  %v429 = vld [vmem:[%s428] sm:$0xff]
  %v430 = vmul.f32 %v429, %v427
  %v431 = vadd.f32 %v337, %v430
  %s432 = sld [smem:[#allocation3 + $0x200]]
  %s433 = sld [smem:[#allocation3 + $0x201]]
  %s434 = sld [smem:[#allocation3 + $0x202]]
  %s435 = sld [smem:[#allocation3 + $0x203]]
  %s436 = sld [smem:[#allocation3 + $0x204]]
  %s437 = sld [smem:[#allocation3 + $0x205]]
  %s438 = sld [smem:[#allocation3 + $0x206]]
  %s439 = sld [smem:[#allocation3 + $0x207]]
  %s440 = sld [smem:[#allocation3 + $0x208]]
  %s441 = sld [smem:[#allocation3 + $0x209]]
  %s442 = sld [smem:[#allocation3 + $0x20a]]
  %s443 = sld [smem:[#allocation3 + $0x20b]]
  %s444 = sld [smem:[#allocation3 + $0x20c]]
  %v445 = vstv %s438
  %v446 = vmul.f32 %v41, %v445
  %v447 = vstv %s439
  %v448 = vmul.f32 %v42, %v447
  %v449 = vadd.f32 %v446, %v448
  %v450 = vstv %s440
  %v451 = vmul.f32 %v43, %v450
  %v452 = vadd.f32 %v449, %v451
  %v453 = vstv %s432
  %v454 = vmul.f32 %v41, %v453
  %v455 = vstv %s433
  %v456 = vmul.f32 %v42, %v455
  %v457 = vadd.f32 %v454, %v456
  %v458 = vstv %s434
  %v459 = vmul.f32 %v43, %v458
  %v460 = vadd.f32 %v457, %v459
  %v461 = vstv %s435
  %v462 = vmul.f32 %v41, %v461
  %v463 = vstv %s436
  %v464 = vmul.f32 %v42, %v463
  %v465 = vadd.f32 %v462, %v464
  %v466 = vstv %s437
  %v467 = vmul.f32 %v43, %v466
  %v468 = vadd.f32 %v465, %v467
  %v469 = vmul.f32 %v452, %v452
  %v470 = vsub.f32 1.0, %v469
  %v471 = vmax.f32 %v470, 1e-24
  %v472 = vrcp.pop %v471
  %v473 = vmul.f32 %v471, %v472
  %v474 = vsub.f32 2.0, %v473
  %v475 = vmul.f32 %v472, %v474
  %v476 = vmul.f32 %v460, %v460
  %v477 = vstv %s441
  %v478 = vmul.f32 %v476, %v477
  %v479 = vmul.f32 %v468, %v468
  %v480 = vstv %s442
  %v481 = vmul.f32 %v479, %v480
  %v482 = vadd.f32 %v478, %v481
  %v483 = vmul.f32 %v482, %v475
  %v484 = vmax.f32 %v452, -0.999999
  %v485 = vmin.f32 %v484, 0.999999
  %v486 = vand.u32 2147483647, %v485
  %v487 = vmul.f32 %v486, -0.0012624911
  %v488 = vadd.f32 %v487, 0.00667009
  %v489 = vmul.f32 %v488, %v486
  %v490 = vadd.f32 %v489, -0.017088126
  %v491 = vmul.f32 %v490, %v486
  %v492 = vadd.f32 %v491, 0.03089188
  %v493 = vmul.f32 %v492, %v486
  %v494 = vadd.f32 %v493, -0.050174303
  %v495 = vmul.f32 %v494, %v486
  %v496 = vadd.f32 %v495, 0.08897899
  %v497 = vmul.f32 %v496, %v486
  %v498 = vadd.f32 %v497, -0.2145988
  %v499 = vmul.f32 %v498, %v486
  %v500 = vadd.f32 %v499, 1.5707963
  %v501 = vsub.f32 1.0, %v486
  %v502 = vmax.f32 %v501, 0.0
  %v503 = vrsqrt.pop %v502
  %v504 = vmul.f32 %v502, %v503
  %vm505 = vcmp.eq.f32.partialorder %v502, inf
  %v506 = vsel %vm505, %v502, %v504
  %vm507 = vcmp.eq.f32.partialorder %v502, 0.0
  %v508 = vand.u32 %v502, 2147483648
  %v509 = vsel %vm507, %v508, %v506
  %v510 = vmul.f32 %v500, %v509
  %vm511 = vcmp.lt.f32.partialorder %v485, 0.0
  %v512 = vsub.f32 3.1415927, %v510
  %v513 = vsel %vm511, %v512, %v510
  %v514 = vmul.f32 %v513, %v513
  %v515 = vmul.f32 %v514, %v483
  %v516 = vstv %s443
  %v517 = vmul.f32 %v515, %v516
  %v518 = vmul.f32 %v517, 1.442695
  %v519 = vpow.pop %v518
  %v520 = vstv %s444
  %v521 = vmul.f32 %v519, %v520
  %s522 = scalar_lea.vmem %s3, 32
  %v523 = vld [vmem:[%s522] sm:$0xff]
  %v524 = vmul.f32 %v523, %v521
  %v525 = vadd.f32 %v431, %v524
  %s526 = sld [smem:[#allocation3 + $0x280]]
  %s527 = sld [smem:[#allocation3 + $0x281]]
  %s528 = sld [smem:[#allocation3 + $0x282]]
  %s529 = sld [smem:[#allocation3 + $0x283]]
  %s530 = sld [smem:[#allocation3 + $0x284]]
  %s531 = sld [smem:[#allocation3 + $0x285]]
  %s532 = sld [smem:[#allocation3 + $0x286]]
  %s533 = sld [smem:[#allocation3 + $0x287]]
  %s534 = sld [smem:[#allocation3 + $0x288]]
  %s535 = sld [smem:[#allocation3 + $0x289]]
  %s536 = sld [smem:[#allocation3 + $0x28a]]
  %s537 = sld [smem:[#allocation3 + $0x28b]]
  %s538 = sld [smem:[#allocation3 + $0x28c]]
  %v539 = vstv %s532
  %v540 = vmul.f32 %v41, %v539
  %v541 = vstv %s533
  %v542 = vmul.f32 %v42, %v541
  %v543 = vadd.f32 %v540, %v542
  %v544 = vstv %s534
  %v545 = vmul.f32 %v43, %v544
  %v546 = vadd.f32 %v543, %v545
  %v547 = vstv %s526
  %v548 = vmul.f32 %v41, %v547
  %v549 = vstv %s527
  %v550 = vmul.f32 %v42, %v549
  %v551 = vadd.f32 %v548, %v550
  %v552 = vstv %s528
  %v553 = vmul.f32 %v43, %v552
  %v554 = vadd.f32 %v551, %v553
  %v555 = vstv %s529
  %v556 = vmul.f32 %v41, %v555
  %v557 = vstv %s530
  %v558 = vmul.f32 %v42, %v557
  %v559 = vadd.f32 %v556, %v558
  %v560 = vstv %s531
  %v561 = vmul.f32 %v43, %v560
  %v562 = vadd.f32 %v559, %v561
  %v563 = vmul.f32 %v546, %v546
  %v564 = vsub.f32 1.0, %v563
  %v565 = vmax.f32 %v564, 1e-24
  %v566 = vrcp.pop %v565
  %v567 = vmul.f32 %v565, %v566
  %v568 = vsub.f32 2.0, %v567
  %v569 = vmul.f32 %v566, %v568
  %v570 = vmul.f32 %v554, %v554
  %v571 = vstv %s535
  %v572 = vmul.f32 %v570, %v571
  %v573 = vmul.f32 %v562, %v562
  %v574 = vstv %s536
  %v575 = vmul.f32 %v573, %v574
  %v576 = vadd.f32 %v572, %v575
  %v577 = vmul.f32 %v576, %v569
  %v578 = vmax.f32 %v546, -0.999999
  %v579 = vmin.f32 %v578, 0.999999
  %v580 = vand.u32 2147483647, %v579
  %v581 = vmul.f32 %v580, -0.0012624911
  %v582 = vadd.f32 %v581, 0.00667009
  %v583 = vmul.f32 %v582, %v580
  %v584 = vadd.f32 %v583, -0.017088126
  %v585 = vmul.f32 %v584, %v580
  %v586 = vadd.f32 %v585, 0.03089188
  %v587 = vmul.f32 %v586, %v580
  %v588 = vadd.f32 %v587, -0.050174303
  %v589 = vmul.f32 %v588, %v580
  %v590 = vadd.f32 %v589, 0.08897899
  %v591 = vmul.f32 %v590, %v580
  %v592 = vadd.f32 %v591, -0.2145988
  %v593 = vmul.f32 %v592, %v580
  %v594 = vadd.f32 %v593, 1.5707963
  %v595 = vsub.f32 1.0, %v580
  %v596 = vmax.f32 %v595, 0.0
  %v597 = vrsqrt.pop %v596
  %v598 = vmul.f32 %v596, %v597
  %vm599 = vcmp.eq.f32.partialorder %v596, inf
  %v600 = vsel %vm599, %v596, %v598
  %vm601 = vcmp.eq.f32.partialorder %v596, 0.0
  %v602 = vand.u32 %v596, 2147483648
  %v603 = vsel %vm601, %v602, %v600
  %v604 = vmul.f32 %v594, %v603
  %vm605 = vcmp.lt.f32.partialorder %v579, 0.0
  %v606 = vsub.f32 3.1415927, %v604
  %v607 = vsel %vm605, %v606, %v604
  %v608 = vmul.f32 %v607, %v607
  %v609 = vmul.f32 %v608, %v577
  %v610 = vstv %s537
  %v611 = vmul.f32 %v609, %v610
  %v612 = vmul.f32 %v611, 1.442695
  %v613 = vpow.pop %v612
  %v614 = vstv %s538
  %v615 = vmul.f32 %v613, %v614
  %s616 = scalar_lea.vmem %s3, 40
  %v617 = vld [vmem:[%s616] sm:$0xff]
  %v618 = vmul.f32 %v617, %v615
  %v619 = vadd.f32 %v525, %v618
  %s620 = sld [smem:[#allocation3 + $0x300]]
  %s621 = sld [smem:[#allocation3 + $0x301]]
  %s622 = sld [smem:[#allocation3 + $0x302]]
  %s623 = sld [smem:[#allocation3 + $0x303]]
  %s624 = sld [smem:[#allocation3 + $0x304]]
  %s625 = sld [smem:[#allocation3 + $0x305]]
  %s626 = sld [smem:[#allocation3 + $0x306]]
  %s627 = sld [smem:[#allocation3 + $0x307]]
  %s628 = sld [smem:[#allocation3 + $0x308]]
  %s629 = sld [smem:[#allocation3 + $0x309]]
  %s630 = sld [smem:[#allocation3 + $0x30a]]
  %s631 = sld [smem:[#allocation3 + $0x30b]]
  %s632 = sld [smem:[#allocation3 + $0x30c]]
  %v633 = vstv %s626
  %v634 = vmul.f32 %v41, %v633
  %v635 = vstv %s627
  %v636 = vmul.f32 %v42, %v635
  %v637 = vadd.f32 %v634, %v636
  %v638 = vstv %s628
  %v639 = vmul.f32 %v43, %v638
  %v640 = vadd.f32 %v637, %v639
  %v641 = vstv %s620
  %v642 = vmul.f32 %v41, %v641
  %v643 = vstv %s621
  %v644 = vmul.f32 %v42, %v643
  %v645 = vadd.f32 %v642, %v644
  %v646 = vstv %s622
  %v647 = vmul.f32 %v43, %v646
  %v648 = vadd.f32 %v645, %v647
  %v649 = vstv %s623
  %v650 = vmul.f32 %v41, %v649
  %v651 = vstv %s624
  %v652 = vmul.f32 %v42, %v651
  %v653 = vadd.f32 %v650, %v652
  %v654 = vstv %s625
  %v655 = vmul.f32 %v43, %v654
  %v656 = vadd.f32 %v653, %v655
  %v657 = vmul.f32 %v640, %v640
  %v658 = vsub.f32 1.0, %v657
  %v659 = vmax.f32 %v658, 1e-24
  %v660 = vrcp.pop %v659
  %v661 = vmul.f32 %v659, %v660
  %v662 = vsub.f32 2.0, %v661
  %v663 = vmul.f32 %v660, %v662
  %v664 = vmul.f32 %v648, %v648
  %v665 = vstv %s629
  %v666 = vmul.f32 %v664, %v665
  %v667 = vmul.f32 %v656, %v656
  %v668 = vstv %s630
  %v669 = vmul.f32 %v667, %v668
  %v670 = vadd.f32 %v666, %v669
  %v671 = vmul.f32 %v670, %v663
  %v672 = vmax.f32 %v640, -0.999999
  %v673 = vmin.f32 %v672, 0.999999
  %v674 = vand.u32 2147483647, %v673
  %v675 = vmul.f32 %v674, -0.0012624911
  %v676 = vadd.f32 %v675, 0.00667009
  %v677 = vmul.f32 %v676, %v674
  %v678 = vadd.f32 %v677, -0.017088126
  %v679 = vmul.f32 %v678, %v674
  %v680 = vadd.f32 %v679, 0.03089188
  %v681 = vmul.f32 %v680, %v674
  %v682 = vadd.f32 %v681, -0.050174303
  %v683 = vmul.f32 %v682, %v674
  %v684 = vadd.f32 %v683, 0.08897899
  %v685 = vmul.f32 %v684, %v674
  %v686 = vadd.f32 %v685, -0.2145988
  %v687 = vmul.f32 %v686, %v674
  %v688 = vadd.f32 %v687, 1.5707963
  %v689 = vsub.f32 1.0, %v674
  %v690 = vmax.f32 %v689, 0.0
  %v691 = vrsqrt.pop %v690
  %v692 = vmul.f32 %v690, %v691
  %vm693 = vcmp.eq.f32.partialorder %v690, inf
  %v694 = vsel %vm693, %v690, %v692
  %vm695 = vcmp.eq.f32.partialorder %v690, 0.0
  %v696 = vand.u32 %v690, 2147483648
  %v697 = vsel %vm695, %v696, %v694
  %v698 = vmul.f32 %v688, %v697
  %vm699 = vcmp.lt.f32.partialorder %v673, 0.0
  %v700 = vsub.f32 3.1415927, %v698
  %v701 = vsel %vm699, %v700, %v698
  %v702 = vmul.f32 %v701, %v701
  %v703 = vmul.f32 %v702, %v671
  %v704 = vstv %s631
  %v705 = vmul.f32 %v703, %v704
  %v706 = vmul.f32 %v705, 1.442695
  %v707 = vpow.pop %v706
  %v708 = vstv %s632
  %v709 = vmul.f32 %v707, %v708
  %s710 = scalar_lea.vmem %s3, 48
  %v711 = vld [vmem:[%s710] sm:$0xff]
  %v712 = vmul.f32 %v711, %v709
  %v713 = vadd.f32 %v619, %v712
  %s714 = sld [smem:[#allocation3 + $0x380]]
  %s715 = sld [smem:[#allocation3 + $0x381]]
  %s716 = sld [smem:[#allocation3 + $0x382]]
  %s717 = sld [smem:[#allocation3 + $0x383]]
  %s718 = sld [smem:[#allocation3 + $0x384]]
  %s719 = sld [smem:[#allocation3 + $0x385]]
  %s720 = sld [smem:[#allocation3 + $0x386]]
  %s721 = sld [smem:[#allocation3 + $0x387]]
  %s722 = sld [smem:[#allocation3 + $0x388]]
  %s723 = sld [smem:[#allocation3 + $0x389]]
  %s724 = sld [smem:[#allocation3 + $0x38a]]
  %s725 = sld [smem:[#allocation3 + $0x38b]]
  %s726 = sld [smem:[#allocation3 + $0x38c]]
  %v727 = vstv %s720
  %v728 = vmul.f32 %v41, %v727
  %v729 = vstv %s721
  %v730 = vmul.f32 %v42, %v729
  %v731 = vadd.f32 %v728, %v730
  %v732 = vstv %s722
  %v733 = vmul.f32 %v43, %v732
  %v734 = vadd.f32 %v731, %v733
  %v735 = vstv %s714
  %v736 = vmul.f32 %v41, %v735
  %v737 = vstv %s715
  %v738 = vmul.f32 %v42, %v737
  %v739 = vadd.f32 %v736, %v738
  %v740 = vstv %s716
  %v741 = vmul.f32 %v43, %v740
  %v742 = vadd.f32 %v739, %v741
  %v743 = vstv %s717
  %v744 = vmul.f32 %v41, %v743
  %v745 = vstv %s718
  %v746 = vmul.f32 %v42, %v745
  %v747 = vadd.f32 %v744, %v746
  %v748 = vstv %s719
  %v749 = vmul.f32 %v43, %v748
  %v750 = vadd.f32 %v747, %v749
  %v751 = vmul.f32 %v734, %v734
  %v752 = vsub.f32 1.0, %v751
  %v753 = vmax.f32 %v752, 1e-24
  %v754 = vrcp.pop %v753
  %v755 = vmul.f32 %v753, %v754
  %v756 = vsub.f32 2.0, %v755
  %v757 = vmul.f32 %v754, %v756
  %v758 = vmul.f32 %v742, %v742
  %v759 = vstv %s723
  %v760 = vmul.f32 %v758, %v759
  %v761 = vmul.f32 %v750, %v750
  %v762 = vstv %s724
  %v763 = vmul.f32 %v761, %v762
  %v764 = vadd.f32 %v760, %v763
  %v765 = vmul.f32 %v764, %v757
  %v766 = vmax.f32 %v734, -0.999999
  %v767 = vmin.f32 %v766, 0.999999
  %v768 = vand.u32 2147483647, %v767
  %v769 = vmul.f32 %v768, -0.0012624911
  %v770 = vadd.f32 %v769, 0.00667009
  %v771 = vmul.f32 %v770, %v768
  %v772 = vadd.f32 %v771, -0.017088126
  %v773 = vmul.f32 %v772, %v768
  %v774 = vadd.f32 %v773, 0.03089188
  %v775 = vmul.f32 %v774, %v768
  %v776 = vadd.f32 %v775, -0.050174303
  %v777 = vmul.f32 %v776, %v768
  %v778 = vadd.f32 %v777, 0.08897899
  %v779 = vmul.f32 %v778, %v768
  %v780 = vadd.f32 %v779, -0.2145988
  %v781 = vmul.f32 %v780, %v768
  %v782 = vadd.f32 %v781, 1.5707963
  %v783 = vsub.f32 1.0, %v768
  %v784 = vmax.f32 %v783, 0.0
  %v785 = vrsqrt.pop %v784
  %v786 = vmul.f32 %v784, %v785
  %vm787 = vcmp.eq.f32.partialorder %v784, inf
  %v788 = vsel %vm787, %v784, %v786
  %vm789 = vcmp.eq.f32.partialorder %v784, 0.0
  %v790 = vand.u32 %v784, 2147483648
  %v791 = vsel %vm789, %v790, %v788
  %v792 = vmul.f32 %v782, %v791
  %vm793 = vcmp.lt.f32.partialorder %v767, 0.0
  %v794 = vsub.f32 3.1415927, %v792
  %v795 = vsel %vm793, %v794, %v792
  %v796 = vmul.f32 %v795, %v795
  %v797 = vmul.f32 %v796, %v765
  %v798 = vstv %s725
  %v799 = vmul.f32 %v797, %v798
  %v800 = vmul.f32 %v799, 1.442695
  %v801 = vpow.pop %v800
  %v802 = vstv %s726
  %v803 = vmul.f32 %v801, %v802
  %s804 = scalar_lea.vmem %s3, 56
  %v805 = vld [vmem:[%s804] sm:$0xff]
  %v806 = vmul.f32 %v805, %v803
  %v807 = vadd.f32 %v713, %v806
  %v808 = vmul.f32 %v807, %v56
  %809 = vst [vmem:[%s4] sm:$0xff] %v808
  // Predicated region
  $region14: #{mixture_of_asg_forward.1} parent=0 // pred_check
    _
  $region15: #{mixture_of_asg_forward.1} parent=0 // pred_check_branch
    %811 = sbr.rel (0) target = $region17
  $region16: #{mixture_of_asg_forward.1} parent=0 // pred_region
    _
  $region17: #{mixture_of_asg_forward.1} parent=0 // pred_fallthru
    _
  // Predicated region
  $region18: #{mixture_of_asg_forward.1} parent=0 // pred_check
    _
  $region19: #{mixture_of_asg_forward.1} parent=0 // pred_check_branch
    %813 = sbr.rel (0) target = $region21
  $region20: #{mixture_of_asg_forward.1} parent=0 // pred_region
    _
  $region21: #{mixture_of_asg_forward.1} parent=0 // pred_fallthru
    _

</llo_original>
